<compile_context>
chip_gen: v7x
topology: tpu7x:2x2x1
jax: 0.10.0
libtpu: 0.0.40
codegen_flags: <defaults>
</compile_context>

<pallas_src>
import functools

import jax
import jax.numpy as jnp
from jax.experimental import pallas as pl
from jax.experimental.pallas import tpu as pltpu


def _spatial_attention_kernel(x_ref, w_ref, o_ref, savg_ref, smax_ref, *,
                              ks, pad, bt, w_img):
    """One grid step = `bt` batch images packed along the lane dimension.

    x_ref   : (C, Hp, bt*Wp)   zero-padded, batch-packed input (VMEM)
    w_ref   : (2*ks*ks,)       conv weights (avg branch pre-scaled by 1/C), SMEM
    o_ref   : (H, bt*W)        sigmoid(conv) output, lane-dense (VMEM)
    savg_ref: (ks, Hp, bt*Wp)  lane-shifted copies of channel-sum map (VMEM)
    smax_ref: (ks, Hp, bt*Wp)  lane-shifted copies of channel-max map (VMEM)
    """
    C, Hp, Lp = x_ref.shape
    H = Hp - 2 * pad
    Wp = w_img + 2 * pad

    # Channel reduction (sum + max over channels); the 1/C of the mean lives
    # in the avg-branch weights, so only a sum is needed here.
    s = x_ref[0].astype(jnp.float32)
    m = s
    for c in range(1, C):
        xc = x_ref[c].astype(jnp.float32)
        s = s + xc
        m = jnp.maximum(m, xc)

    # Hoist the kx (lane) shifts out of the tap loop:
    #   view_d[h, l] = map[h, l + d], with d = kx - pad.
    # Zero-fill at the array edges never touches a valid output lane because
    # every image sits in its own zero-padded slot of width Wp.
    def lane_shift(a, d):
        if d == 0:
            return a
        z = jnp.zeros((a.shape[0], abs(d)), a.dtype)
        if d > 0:
            return jnp.concatenate([a[:, d:], z], axis=-1)
        return jnp.concatenate([z, a[:, :a.shape[1] + d]], axis=-1)

    for kx in range(ks):
        savg_ref[kx] = lane_shift(s, kx - pad)
        smax_ref[kx] = lane_shift(m, kx - pad)

    # 2*ks*ks-tap stencil, fully unrolled: SMEM scalar * sublane-offset view.
    acc = jnp.zeros((H, Lp), jnp.float32)
    for c, src in enumerate((savg_ref, smax_ref)):
        for ky in range(ks):
            for kx in range(ks):
                wv = w_ref[(c * ks + ky) * ks + kx]
                acc = acc + wv * src[kx, ky:ky + H, :]

    # sigmoid(x) = 0.5 * (tanh(x/2) + 1): single EUP transcendental, stable.
    y = 0.5 * (jnp.tanh(0.5 * acc) + 1.0)

    # Compact each image's W valid columns into a lane-dense output slab.
    pieces = [y[:, i * Wp + pad: i * Wp + pad + w_img] for i in range(bt)]
    o_ref[...] = jnp.concatenate(pieces, axis=-1).astype(o_ref.dtype)


def spatial_attention(x_nchw, conv_weight, *, kernel_size=7):
    """x_nchw: (B, C, H, W); conv_weight: (1, 2, ks, ks) (PyTorch OIHW, bias=False)."""
    assert kernel_size in (3, 7), "kernel size must be 3 or 7"
    pad = 3 if kernel_size == 7 else 1
    B, C, H, W = x_nchw.shape
    Hp, Wp = H + 2 * pad, W + 2 * pad

    # Pack bt images along lanes so blocks are lane-dense (target >=128 lanes),
    # while keeping bt a divisor of B.
    bt = min(B, max(1, -(-128 // W)))
    while B % bt:
        bt -= 1
    G = B // bt
    Lp = bt * Wp

    # Zero-pad spatially once in the wrapper (channel mean/max of zeros is
    # zero, which matches conv2d's zero padding of the [avg, max] maps), then
    # pack bt consecutive images side-by-side along the last (lane) axis.
    x_pad = jnp.pad(x_nchw, ((0, 0), (0, 0), (pad, pad), (pad, pad)))
    x_pack = (x_pad.reshape(G, bt, C, Hp, Wp)
                   .transpose(0, 2, 3, 1, 4)
                   .reshape(G, C, Hp, Lp))

    # OIHW (1, 2, ks, ks) -> flat (2*ks*ks,) SMEM scalars; fold 1/C into the
    # avg branch so the kernel only needs a channel sum.
    w2 = conv_weight.reshape(2, kernel_size, kernel_size).astype(jnp.float32)
    w2 = jnp.concatenate([w2[:1] / C, w2[1:]], axis=0)
    w_flat = w2.reshape(-1)

    kernel = functools.partial(_spatial_attention_kernel, ks=kernel_size,
                               pad=pad, bt=bt, w_img=W)
    itemsize = jnp.dtype(x_nchw.dtype).itemsize
    out = pl.pallas_call(
        kernel,
        out_shape=jax.ShapeDtypeStruct((G, H, bt * W), x_nchw.dtype),
        grid=(G,),
        in_specs=[
            pl.BlockSpec((None, C, Hp, Lp), lambda g: (g, 0, 0, 0)),
            pl.BlockSpec(memory_space=pltpu.MemorySpace.SMEM),
        ],
        out_specs=pl.BlockSpec((None, H, bt * W), lambda g: (g, 0, 0)),
        scratch_shapes=[
            pltpu.VMEM((kernel_size, Hp, Lp), jnp.float32),
            pltpu.VMEM((kernel_size, Hp, Lp), jnp.float32),
        ],
        compiler_params=pltpu.CompilerParams(
            # TODO(synk): on v7x use CORE_PARALLEL once the batched grid has
            # >=2 steps, and re-derive bt / vmem_limit_bytes for 64 MiB VMEM.
            dimension_semantics=("parallel",)),
        cost_estimate=pl.CostEstimate(
            flops=2 * B * H * W * (2 * kernel_size * kernel_size)
                  + 2 * B * C * H * W,
            transcendentals=B * H * W,
            bytes_accessed=B * C * H * W * itemsize + B * H * W * itemsize),
    )(x_pack, w_flat)

    # (G, H, bt*W) -> (B, 1, H, W)
    return (out.reshape(G, H, bt, W)
               .transpose(0, 2, 1, 3)
               .reshape(B, 1, H, W))


def _reference(x, conv_weight, *, kernel_size=7):
    """Pure-JAX reference matching the PyTorch module."""
    pad = 3 if kernel_size == 7 else 1
    avg = jnp.mean(x, axis=1, keepdims=True)
    mx = jnp.max(x, axis=1, keepdims=True)
    cat = jnp.concatenate([avg, mx], axis=1)
    y = jax.lax.conv_general_dilated(
        cat, conv_weight, window_strides=(1, 1),
        padding=[(pad, pad), (pad, pad)],
        dimension_numbers=("NCHW", "OIHW", "NCHW"),
        precision=jax.lax.Precision.HIGHEST)
    return jax.nn.sigmoid(y)


if __name__ == "__main__":
    key = jax.random.PRNGKey(0)
    kx, kw = jax.random.split(key)

    B, C, H, W = 2, 4, 16, 16
    ks = 7
    x = jax.random.normal(kx, (B, C, H, W), jnp.float32)            # NCHW like PyTorch
    conv_w = (jax.random.normal(kw, (1, 2, ks, ks), jnp.float32)
              / jnp.sqrt(2.0 * ks * ks))                            # OIHW, bias=False

    fwd = jax.jit(functools.partial(spatial_attention, kernel_size=ks))
    out = fwd(x, conv_w)
    jax.block_until_ready(out)

    assert out.shape == (B, 1, H, W), out.shape
    assert out.dtype == jnp.float32

    ref = _reference(x, conv_w, kernel_size=ks)
    err = float(jnp.max(jnp.abs(out - ref)))
    assert err < 1e-4, f"max abs err vs reference = {err}"
    print("KERNEL_OK")
</pallas_src>

<mosaic_0001>
module attributes {stable_mosaic.version = 11 : i64} {
  func.func @_spatial_attention_kernel(%arg0: i32, %arg1: memref<1x4x22x44xf32, #tpu.memory_space<vmem>>, %arg2: memref<98xf32, #tpu.memory_space<smem>>, %arg3: memref<1x16x32xf32, #tpu.memory_space<vmem>>, %arg4: memref<7x22x44xf32, #tpu.memory_space<vmem>>, %arg5: memref<7x22x44xf32, #tpu.memory_space<vmem>>) attributes {dimension_semantics = [#tpu.dimension_semantics<parallel>], iteration_bounds = array<i64: 1>, scalar_prefetch = 0 : i64, scratch_operands = 2 : i64, tpu.core_type = #tpu.core_type<tc>, window_params = [{transform_indices = @transform_0, window_bounds = array<i64: 1, 4, 22, 44>}, {transform_indices = @transform_1, window_bounds = array<i64: 98>}, {transform_indices = @transform_2, window_bounds = array<i64: 1, 16, 32>}]} {
    %c0 = arith.constant 0 : index
    %c0_0 = arith.constant 0 : index
    %c0_1 = arith.constant 0 : index
    %c0_2 = arith.constant 0 : index
    %0 = vector.load %arg1[%c0, %c0_0, %c0_1, %c0_2] : memref<1x4x22x44xf32, #tpu.memory_space<vmem>>, vector<1x1x22x44xf32>
    %1 = vector.shape_cast %0 : vector<1x1x22x44xf32> to vector<22x44xf32>
    %c0_3 = arith.constant 0 : index
    %c1 = arith.constant 1 : index
    %c0_4 = arith.constant 0 : index
    %c0_5 = arith.constant 0 : index
    %2 = vector.load %arg1[%c0_3, %c1, %c0_4, %c0_5] : memref<1x4x22x44xf32, #tpu.memory_space<vmem>>, vector<1x1x22x44xf32>
    %3 = vector.shape_cast %2 : vector<1x1x22x44xf32> to vector<22x44xf32>
    %4 = arith.addf %1, %3 : vector<22x44xf32>
    %5 = arith.maximumf %1, %3 : vector<22x44xf32>
    %c0_6 = arith.constant 0 : index
    %c2 = arith.constant 2 : index
    %c0_7 = arith.constant 0 : index
    %c0_8 = arith.constant 0 : index
    %6 = vector.load %arg1[%c0_6, %c2, %c0_7, %c0_8] : memref<1x4x22x44xf32, #tpu.memory_space<vmem>>, vector<1x1x22x44xf32>
    %7 = vector.shape_cast %6 : vector<1x1x22x44xf32> to vector<22x44xf32>
    %8 = arith.addf %4, %7 : vector<22x44xf32>
    %9 = arith.maximumf %5, %7 : vector<22x44xf32>
    %c0_9 = arith.constant 0 : index
    %c3 = arith.constant 3 : index
    %c0_10 = arith.constant 0 : index
    %c0_11 = arith.constant 0 : index
    %10 = vector.load %arg1[%c0_9, %c3, %c0_10, %c0_11] : memref<1x4x22x44xf32, #tpu.memory_space<vmem>>, vector<1x1x22x44xf32>
    %11 = vector.shape_cast %10 : vector<1x1x22x44xf32> to vector<22x44xf32>
    %12 = arith.addf %8, %11 : vector<22x44xf32>
    %13 = arith.maximumf %9, %11 : vector<22x44xf32>
    %cst = arith.constant 0.000000e+00 : f32
    %14 = vector.broadcast %cst : f32 to vector<22x3xf32>
    %15 = vector.extract_strided_slice %12 {offsets = [0, 0], sizes = [22, 41], strides = [1, 1]} : vector<22x44xf32> to vector<22x41xf32>
    %16 = tpu.concatenate %14, %15 in 1 : vector<22x3xf32>, vector<22x41xf32> -> vector<22x44xf32>
    %c0_12 = arith.constant 0 : index
    %c0_13 = arith.constant 0 : index
    %c0_14 = arith.constant 0 : index
    %17 = vector.load %arg4[%c0_12, %c0_13, %c0_14] : memref<7x22x44xf32, #tpu.memory_space<vmem>>, vector<1x22x44xf32>
    %18 = vector.shape_cast %17 : vector<1x22x44xf32> to vector<22x44xf32>
    %19 = vector.shape_cast %16 : vector<22x44xf32> to vector<1x22x44xf32>
    tpu.vector_store %arg4[%c0_12, %c0_13, %c0_14], %19 {strides = array<i32>} : memref<7x22x44xf32, #tpu.memory_space<vmem>>, vector<1x22x44xf32>,
    %cst_15 = arith.constant 0.000000e+00 : f32
    %20 = vector.broadcast %cst_15 : f32 to vector<22x3xf32>
    %21 = vector.extract_strided_slice %13 {offsets = [0, 0], sizes = [22, 41], strides = [1, 1]} : vector<22x44xf32> to vector<22x41xf32>
    %22 = tpu.concatenate %20, %21 in 1 : vector<22x3xf32>, vector<22x41xf32> -> vector<22x44xf32>
    %c0_16 = arith.constant 0 : index
    %c0_17 = arith.constant 0 : index
    %c0_18 = arith.constant 0 : index
    %23 = vector.load %arg5[%c0_16, %c0_17, %c0_18] : memref<7x22x44xf32, #tpu.memory_space<vmem>>, vector<1x22x44xf32>
    %24 = vector.shape_cast %23 : vector<1x22x44xf32> to vector<22x44xf32>
    %25 = vector.shape_cast %22 : vector<22x44xf32> to vector<1x22x44xf32>
    tpu.vector_store %arg5[%c0_16, %c0_17, %c0_18], %25 {strides = array<i32>} : memref<7x22x44xf32, #tpu.memory_space<vmem>>, vector<1x22x44xf32>,
    %cst_19 = arith.constant 0.000000e+00 : f32
    %26 = vector.broadcast %cst_19 : f32 to vector<22x2xf32>
    %27 = vector.extract_strided_slice %12 {offsets = [0, 0], sizes = [22, 42], strides = [1, 1]} : vector<22x44xf32> to vector<22x42xf32>
    %28 = tpu.concatenate %26, %27 in 1 : vector<22x2xf32>, vector<22x42xf32> -> vector<22x44xf32>
    %c1_20 = arith.constant 1 : index
    %c0_21 = arith.constant 0 : index
    %c0_22 = arith.constant 0 : index
    %29 = vector.load %arg4[%c1_20, %c0_21, %c0_22] : memref<7x22x44xf32, #tpu.memory_space<vmem>>, vector<1x22x44xf32>
    %30 = vector.shape_cast %29 : vector<1x22x44xf32> to vector<22x44xf32>
    %31 = vector.shape_cast %28 : vector<22x44xf32> to vector<1x22x44xf32>
    tpu.vector_store %arg4[%c1_20, %c0_21, %c0_22], %31 {strides = array<i32>} : memref<7x22x44xf32, #tpu.memory_space<vmem>>, vector<1x22x44xf32>,
    %cst_23 = arith.constant 0.000000e+00 : f32
    %32 = vector.broadcast %cst_23 : f32 to vector<22x2xf32>
    %33 = vector.extract_strided_slice %13 {offsets = [0, 0], sizes = [22, 42], strides = [1, 1]} : vector<22x44xf32> to vector<22x42xf32>
    %34 = tpu.concatenate %32, %33 in 1 : vector<22x2xf32>, vector<22x42xf32> -> vector<22x44xf32>
    %c1_24 = arith.constant 1 : index
    %c0_25 = arith.constant 0 : index
    %c0_26 = arith.constant 0 : index
    %35 = vector.load %arg5[%c1_24, %c0_25, %c0_26] : memref<7x22x44xf32, #tpu.memory_space<vmem>>, vector<1x22x44xf32>
    %36 = vector.shape_cast %35 : vector<1x22x44xf32> to vector<22x44xf32>
    %37 = vector.shape_cast %34 : vector<22x44xf32> to vector<1x22x44xf32>
    tpu.vector_store %arg5[%c1_24, %c0_25, %c0_26], %37 {strides = array<i32>} : memref<7x22x44xf32, #tpu.memory_space<vmem>>, vector<1x22x44xf32>,
    %cst_27 = arith.constant 0.000000e+00 : f32
    %38 = vector.broadcast %cst_27 : f32 to vector<22x1xf32>
    %39 = vector.extract_strided_slice %12 {offsets = [0, 0], sizes = [22, 43], strides = [1, 1]} : vector<22x44xf32> to vector<22x43xf32>
    %40 = tpu.concatenate %38, %39 in 1 : vector<22x1xf32>, vector<22x43xf32> -> vector<22x44xf32>
    %c2_28 = arith.constant 2 : index
    %c0_29 = arith.constant 0 : index
    %c0_30 = arith.constant 0 : index
    %41 = vector.load %arg4[%c2_28, %c0_29, %c0_30] : memref<7x22x44xf32, #tpu.memory_space<vmem>>, vector<1x22x44xf32>
    %42 = vector.shape_cast %41 : vector<1x22x44xf32> to vector<22x44xf32>
    %43 = vector.shape_cast %40 : vector<22x44xf32> to vector<1x22x44xf32>
    tpu.vector_store %arg4[%c2_28, %c0_29, %c0_30], %43 {strides = array<i32>} : memref<7x22x44xf32, #tpu.memory_space<vmem>>, vector<1x22x44xf32>,
    %cst_31 = arith.constant 0.000000e+00 : f32
    %44 = vector.broadcast %cst_31 : f32 to vector<22x1xf32>
    %45 = vector.extract_strided_slice %13 {offsets = [0, 0], sizes = [22, 43], strides = [1, 1]} : vector<22x44xf32> to vector<22x43xf32>
    %46 = tpu.concatenate %44, %45 in 1 : vector<22x1xf32>, vector<22x43xf32> -> vector<22x44xf32>
    %c2_32 = arith.constant 2 : index
    %c0_33 = arith.constant 0 : index
    %c0_34 = arith.constant 0 : index
    %47 = vector.load %arg5[%c2_32, %c0_33, %c0_34] : memref<7x22x44xf32, #tpu.memory_space<vmem>>, vector<1x22x44xf32>
    %48 = vector.shape_cast %47 : vector<1x22x44xf32> to vector<22x44xf32>
    %49 = vector.shape_cast %46 : vector<22x44xf32> to vector<1x22x44xf32>
    tpu.vector_store %arg5[%c2_32, %c0_33, %c0_34], %49 {strides = array<i32>} : memref<7x22x44xf32, #tpu.memory_space<vmem>>, vector<1x22x44xf32>,
    %c3_35 = arith.constant 3 : index
    %c0_36 = arith.constant 0 : index
    %c0_37 = arith.constant 0 : index
    %50 = vector.load %arg4[%c3_35, %c0_36, %c0_37] : memref<7x22x44xf32, #tpu.memory_space<vmem>>, vector<1x22x44xf32>
    %51 = vector.shape_cast %50 : vector<1x22x44xf32> to vector<22x44xf32>
    %52 = vector.shape_cast %12 : vector<22x44xf32> to vector<1x22x44xf32>
    tpu.vector_store %arg4[%c3_35, %c0_36, %c0_37], %52 {strides = array<i32>} : memref<7x22x44xf32, #tpu.memory_space<vmem>>, vector<1x22x44xf32>,
    %c3_38 = arith.constant 3 : index
    %c0_39 = arith.constant 0 : index
    %c0_40 = arith.constant 0 : index
    %53 = vector.load %arg5[%c3_38, %c0_39, %c0_40] : memref<7x22x44xf32, #tpu.memory_space<vmem>>, vector<1x22x44xf32>
    %54 = vector.shape_cast %53 : vector<1x22x44xf32> to vector<22x44xf32>
    %55 = vector.shape_cast %13 : vector<22x44xf32> to vector<1x22x44xf32>
    tpu.vector_store %arg5[%c3_38, %c0_39, %c0_40], %55 {strides = array<i32>} : memref<7x22x44xf32, #tpu.memory_space<vmem>>, vector<1x22x44xf32>,
    %cst_41 = arith.constant 0.000000e+00 : f32
    %56 = vector.broadcast %cst_41 : f32 to vector<22x1xf32>
    %57 = vector.extract_strided_slice %12 {offsets = [0, 1], sizes = [22, 43], strides = [1, 1]} : vector<22x44xf32> to vector<22x43xf32>
    %58 = tpu.concatenate %57, %56 in 1 : vector<22x43xf32>, vector<22x1xf32> -> vector<22x44xf32>
    %c4 = arith.constant 4 : index
    %c0_42 = arith.constant 0 : index
    %c0_43 = arith.constant 0 : index
    %59 = vector.load %arg4[%c4, %c0_42, %c0_43] : memref<7x22x44xf32, #tpu.memory_space<vmem>>, vector<1x22x44xf32>
    %60 = vector.shape_cast %59 : vector<1x22x44xf32> to vector<22x44xf32>
    %61 = vector.shape_cast %58 : vector<22x44xf32> to vector<1x22x44xf32>
    tpu.vector_store %arg4[%c4, %c0_42, %c0_43], %61 {strides = array<i32>} : memref<7x22x44xf32, #tpu.memory_space<vmem>>, vector<1x22x44xf32>,
    %cst_44 = arith.constant 0.000000e+00 : f32
    %62 = vector.broadcast %cst_44 : f32 to vector<22x1xf32>
    %63 = vector.extract_strided_slice %13 {offsets = [0, 1], sizes = [22, 43], strides = [1, 1]} : vector<22x44xf32> to vector<22x43xf32>
    %64 = tpu.concatenate %63, %62 in 1 : vector<22x43xf32>, vector<22x1xf32> -> vector<22x44xf32>
    %c4_45 = arith.constant 4 : index
    %c0_46 = arith.constant 0 : index
    %c0_47 = arith.constant 0 : index
    %65 = vector.load %arg5[%c4_45, %c0_46, %c0_47] : memref<7x22x44xf32, #tpu.memory_space<vmem>>, vector<1x22x44xf32>
    %66 = vector.shape_cast %65 : vector<1x22x44xf32> to vector<22x44xf32>
    %67 = vector.shape_cast %64 : vector<22x44xf32> to vector<1x22x44xf32>
    tpu.vector_store %arg5[%c4_45, %c0_46, %c0_47], %67 {strides = array<i32>} : memref<7x22x44xf32, #tpu.memory_space<vmem>>, vector<1x22x44xf32>,
    %cst_48 = arith.constant 0.000000e+00 : f32
    %68 = vector.broadcast %cst_48 : f32 to vector<22x2xf32>
    %69 = vector.extract_strided_slice %12 {offsets = [0, 2], sizes = [22, 42], strides = [1, 1]} : vector<22x44xf32> to vector<22x42xf32>
    %70 = tpu.concatenate %69, %68 in 1 : vector<22x42xf32>, vector<22x2xf32> -> vector<22x44xf32>
    %c5 = arith.constant 5 : index
    %c0_49 = arith.constant 0 : index
    %c0_50 = arith.constant 0 : index
    %71 = vector.load %arg4[%c5, %c0_49, %c0_50] : memref<7x22x44xf32, #tpu.memory_space<vmem>>, vector<1x22x44xf32>
    %72 = vector.shape_cast %71 : vector<1x22x44xf32> to vector<22x44xf32>
    %73 = vector.shape_cast %70 : vector<22x44xf32> to vector<1x22x44xf32>
    tpu.vector_store %arg4[%c5, %c0_49, %c0_50], %73 {strides = array<i32>} : memref<7x22x44xf32, #tpu.memory_space<vmem>>, vector<1x22x44xf32>,
    %cst_51 = arith.constant 0.000000e+00 : f32
    %74 = vector.broadcast %cst_51 : f32 to vector<22x2xf32>
    %75 = vector.extract_strided_slice %13 {offsets = [0, 2], sizes = [22, 42], strides = [1, 1]} : vector<22x44xf32> to vector<22x42xf32>
    %76 = tpu.concatenate %75, %74 in 1 : vector<22x42xf32>, vector<22x2xf32> -> vector<22x44xf32>
    %c5_52 = arith.constant 5 : index
    %c0_53 = arith.constant 0 : index
    %c0_54 = arith.constant 0 : index
    %77 = vector.load %arg5[%c5_52, %c0_53, %c0_54] : memref<7x22x44xf32, #tpu.memory_space<vmem>>, vector<1x22x44xf32>
    %78 = vector.shape_cast %77 : vector<1x22x44xf32> to vector<22x44xf32>
    %79 = vector.shape_cast %76 : vector<22x44xf32> to vector<1x22x44xf32>
    tpu.vector_store %arg5[%c5_52, %c0_53, %c0_54], %79 {strides = array<i32>} : memref<7x22x44xf32, #tpu.memory_space<vmem>>, vector<1x22x44xf32>,
    %cst_55 = arith.constant 0.000000e+00 : f32
    %80 = vector.broadcast %cst_55 : f32 to vector<22x3xf32>
    %81 = vector.extract_strided_slice %12 {offsets = [0, 3], sizes = [22, 41], strides = [1, 1]} : vector<22x44xf32> to vector<22x41xf32>
    %82 = tpu.concatenate %81, %80 in 1 : vector<22x41xf32>, vector<22x3xf32> -> vector<22x44xf32>
    %c6 = arith.constant 6 : index
    %c0_56 = arith.constant 0 : index
    %c0_57 = arith.constant 0 : index
    %83 = vector.load %arg4[%c6, %c0_56, %c0_57] : memref<7x22x44xf32, #tpu.memory_space<vmem>>, vector<1x22x44xf32>
    %84 = vector.shape_cast %83 : vector<1x22x44xf32> to vector<22x44xf32>
    %85 = vector.shape_cast %82 : vector<22x44xf32> to vector<1x22x44xf32>
    tpu.vector_store %arg4[%c6, %c0_56, %c0_57], %85 {strides = array<i32>} : memref<7x22x44xf32, #tpu.memory_space<vmem>>, vector<1x22x44xf32>,
    %cst_58 = arith.constant 0.000000e+00 : f32
    %86 = vector.broadcast %cst_58 : f32 to vector<22x3xf32>
    %87 = vector.extract_strided_slice %13 {offsets = [0, 3], sizes = [22, 41], strides = [1, 1]} : vector<22x44xf32> to vector<22x41xf32>
    %88 = tpu.concatenate %87, %86 in 1 : vector<22x41xf32>, vector<22x3xf32> -> vector<22x44xf32>
    %c6_59 = arith.constant 6 : index
    %c0_60 = arith.constant 0 : index
    %c0_61 = arith.constant 0 : index
    %89 = vector.load %arg5[%c6_59, %c0_60, %c0_61] : memref<7x22x44xf32, #tpu.memory_space<vmem>>, vector<1x22x44xf32>
    %90 = vector.shape_cast %89 : vector<1x22x44xf32> to vector<22x44xf32>
    %91 = vector.shape_cast %88 : vector<22x44xf32> to vector<1x22x44xf32>
    tpu.vector_store %arg5[%c6_59, %c0_60, %c0_61], %91 {strides = array<i32>} : memref<7x22x44xf32, #tpu.memory_space<vmem>>, vector<1x22x44xf32>,
    %cst_62 = arith.constant 0.000000e+00 : f32
    %92 = vector.broadcast %cst_62 : f32 to vector<16x44xf32>
    %c0_63 = arith.constant 0 : index
    %93 = memref.load %arg2[%c0_63] : memref<98xf32, #tpu.memory_space<smem>>
    %c0_64 = arith.constant 0 : index
    %c0_65 = arith.constant 0 : index
    %c0_66 = arith.constant 0 : index
    %94 = vector.load %arg4[%c0_64, %c0_65, %c0_66] : memref<7x22x44xf32, #tpu.memory_space<vmem>>, vector<1x16x44xf32>
    %95 = vector.shape_cast %94 : vector<1x16x44xf32> to vector<16x44xf32>
    %96 = vector.broadcast %93 : f32 to vector<16x44xf32>
    %97 = arith.mulf %96, %95 : vector<16x44xf32>
    %98 = arith.addf %92, %97 : vector<16x44xf32>
    %c1_67 = arith.constant 1 : index
    %99 = memref.load %arg2[%c1_67] : memref<98xf32, #tpu.memory_space<smem>>
    %c1_68 = arith.constant 1 : index
    %c0_69 = arith.constant 0 : index
    %c0_70 = arith.constant 0 : index
    %100 = vector.load %arg4[%c1_68, %c0_69, %c0_70] : memref<7x22x44xf32, #tpu.memory_space<vmem>>, vector<1x16x44xf32>
    %101 = vector.shape_cast %100 : vector<1x16x44xf32> to vector<16x44xf32>
    %102 = vector.broadcast %99 : f32 to vector<16x44xf32>
    %103 = arith.mulf %102, %101 : vector<16x44xf32>
    %104 = arith.addf %98, %103 : vector<16x44xf32>
    %c2_71 = arith.constant 2 : index
    %105 = memref.load %arg2[%c2_71] : memref<98xf32, #tpu.memory_space<smem>>
    %c2_72 = arith.constant 2 : index
    %c0_73 = arith.constant 0 : index
    %c0_74 = arith.constant 0 : index
    %106 = vector.load %arg4[%c2_72, %c0_73, %c0_74] : memref<7x22x44xf32, #tpu.memory_space<vmem>>, vector<1x16x44xf32>
    %107 = vector.shape_cast %106 : vector<1x16x44xf32> to vector<16x44xf32>
    %108 = vector.broadcast %105 : f32 to vector<16x44xf32>
    %109 = arith.mulf %108, %107 : vector<16x44xf32>
    %110 = arith.addf %104, %109 : vector<16x44xf32>
    %c3_75 = arith.constant 3 : index
    %111 = memref.load %arg2[%c3_75] : memref<98xf32, #tpu.memory_space<smem>>
    %c3_76 = arith.constant 3 : index
    %c0_77 = arith.constant 0 : index
    %c0_78 = arith.constant 0 : index
    %112 = vector.load %arg4[%c3_76, %c0_77, %c0_78] : memref<7x22x44xf32, #tpu.memory_space<vmem>>, vector<1x16x44xf32>
    %113 = vector.shape_cast %112 : vector<1x16x44xf32> to vector<16x44xf32>
    %114 = vector.broadcast %111 : f32 to vector<16x44xf32>
    %115 = arith.mulf %114, %113 : vector<16x44xf32>
    %116 = arith.addf %110, %115 : vector<16x44xf32>
    %c4_79 = arith.constant 4 : index
    %117 = memref.load %arg2[%c4_79] : memref<98xf32, #tpu.memory_space<smem>>
    %c4_80 = arith.constant 4 : index
    %c0_81 = arith.constant 0 : index
    %c0_82 = arith.constant 0 : index
    %118 = vector.load %arg4[%c4_80, %c0_81, %c0_82] : memref<7x22x44xf32, #tpu.memory_space<vmem>>, vector<1x16x44xf32>
    %119 = vector.shape_cast %118 : vector<1x16x44xf32> to vector<16x44xf32>
    %120 = vector.broadcast %117 : f32 to vector<16x44xf32>
    %121 = arith.mulf %120, %119 : vector<16x44xf32>
    %122 = arith.addf %116, %121 : vector<16x44xf32>
    %c5_83 = arith.constant 5 : index
    %123 = memref.load %arg2[%c5_83] : memref<98xf32, #tpu.memory_space<smem>>
    %c5_84 = arith.constant 5 : index
    %c0_85 = arith.constant 0 : index
    %c0_86 = arith.constant 0 : index
    %124 = vector.load %arg4[%c5_84, %c0_85, %c0_86] : memref<7x22x44xf32, #tpu.memory_space<vmem>>, vector<1x16x44xf32>
    %125 = vector.shape_cast %124 : vector<1x16x44xf32> to vector<16x44xf32>
    %126 = vector.broadcast %123 : f32 to vector<16x44xf32>
    %127 = arith.mulf %126, %125 : vector<16x44xf32>
    %128 = arith.addf %122, %127 : vector<16x44xf32>
    %c6_87 = arith.constant 6 : index
    %129 = memref.load %arg2[%c6_87] : memref<98xf32, #tpu.memory_space<smem>>
    %c6_88 = arith.constant 6 : index
    %c0_89 = arith.constant 0 : index
    %c0_90 = arith.constant 0 : index
    %130 = vector.load %arg4[%c6_88, %c0_89, %c0_90] : memref<7x22x44xf32, #tpu.memory_space<vmem>>, vector<1x16x44xf32>
    %131 = vector.shape_cast %130 : vector<1x16x44xf32> to vector<16x44xf32>
    %132 = vector.broadcast %129 : f32 to vector<16x44xf32>
    %133 = arith.mulf %132, %131 : vector<16x44xf32>
    %134 = arith.addf %128, %133 : vector<16x44xf32>
    %c7 = arith.constant 7 : index
    %135 = memref.load %arg2[%c7] : memref<98xf32, #tpu.memory_space<smem>>
    %c0_91 = arith.constant 0 : index
    %c1_92 = arith.constant 1 : index
    %c0_93 = arith.constant 0 : index
    %136 = vector.load %arg4[%c0_91, %c1_92, %c0_93] : memref<7x22x44xf32, #tpu.memory_space<vmem>>, vector<1x16x44xf32>
    %137 = vector.shape_cast %136 : vector<1x16x44xf32> to vector<16x44xf32>
    %138 = vector.broadcast %135 : f32 to vector<16x44xf32>
    %139 = arith.mulf %138, %137 : vector<16x44xf32>
    %140 = arith.addf %134, %139 : vector<16x44xf32>
    %c8 = arith.constant 8 : index
    %141 = memref.load %arg2[%c8] : memref<98xf32, #tpu.memory_space<smem>>
    %c1_94 = arith.constant 1 : index
    %c1_95 = arith.constant 1 : index
    %c0_96 = arith.constant 0 : index
    %142 = vector.load %arg4[%c1_94, %c1_95, %c0_96] : memref<7x22x44xf32, #tpu.memory_space<vmem>>, vector<1x16x44xf32>
    %143 = vector.shape_cast %142 : vector<1x16x44xf32> to vector<16x44xf32>
    %144 = vector.broadcast %141 : f32 to vector<16x44xf32>
    %145 = arith.mulf %144, %143 : vector<16x44xf32>
    %146 = arith.addf %140, %145 : vector<16x44xf32>
    %c9 = arith.constant 9 : index
    %147 = memref.load %arg2[%c9] : memref<98xf32, #tpu.memory_space<smem>>
    %c2_97 = arith.constant 2 : index
    %c1_98 = arith.constant 1 : index
    %c0_99 = arith.constant 0 : index
    %148 = vector.load %arg4[%c2_97, %c1_98, %c0_99] : memref<7x22x44xf32, #tpu.memory_space<vmem>>, vector<1x16x44xf32>
    %149 = vector.shape_cast %148 : vector<1x16x44xf32> to vector<16x44xf32>
    %150 = vector.broadcast %147 : f32 to vector<16x44xf32>
    %151 = arith.mulf %150, %149 : vector<16x44xf32>
    %152 = arith.addf %146, %151 : vector<16x44xf32>
    %c10 = arith.constant 10 : index
    %153 = memref.load %arg2[%c10] : memref<98xf32, #tpu.memory_space<smem>>
    %c3_100 = arith.constant 3 : index
    %c1_101 = arith.constant 1 : index
    %c0_102 = arith.constant 0 : index
    %154 = vector.load %arg4[%c3_100, %c1_101, %c0_102] : memref<7x22x44xf32, #tpu.memory_space<vmem>>, vector<1x16x44xf32>
    %155 = vector.shape_cast %154 : vector<1x16x44xf32> to vector<16x44xf32>
    %156 = vector.broadcast %153 : f32 to vector<16x44xf32>
    %157 = arith.mulf %156, %155 : vector<16x44xf32>
    %158 = arith.addf %152, %157 : vector<16x44xf32>
    %c11 = arith.constant 11 : index
    %159 = memref.load %arg2[%c11] : memref<98xf32, #tpu.memory_space<smem>>
    %c4_103 = arith.constant 4 : index
    %c1_104 = arith.constant 1 : index
    %c0_105 = arith.constant 0 : index
    %160 = vector.load %arg4[%c4_103, %c1_104, %c0_105] : memref<7x22x44xf32, #tpu.memory_space<vmem>>, vector<1x16x44xf32>
    %161 = vector.shape_cast %160 : vector<1x16x44xf32> to vector<16x44xf32>
    %162 = vector.broadcast %159 : f32 to vector<16x44xf32>
    %163 = arith.mulf %162, %161 : vector<16x44xf32>
    %164 = arith.addf %158, %163 : vector<16x44xf32>
    %c12 = arith.constant 12 : index
    %165 = memref.load %arg2[%c12] : memref<98xf32, #tpu.memory_space<smem>>
    %c5_106 = arith.constant 5 : index
    %c1_107 = arith.constant 1 : index
    %c0_108 = arith.constant 0 : index
    %166 = vector.load %arg4[%c5_106, %c1_107, %c0_108] : memref<7x22x44xf32, #tpu.memory_space<vmem>>, vector<1x16x44xf32>
    %167 = vector.shape_cast %166 : vector<1x16x44xf32> to vector<16x44xf32>
    %168 = vector.broadcast %165 : f32 to vector<16x44xf32>
    %169 = arith.mulf %168, %167 : vector<16x44xf32>
    %170 = arith.addf %164, %169 : vector<16x44xf32>
    %c13 = arith.constant 13 : index
    %171 = memref.load %arg2[%c13] : memref<98xf32, #tpu.memory_space<smem>>
    %c6_109 = arith.constant 6 : index
    %c1_110 = arith.constant 1 : index
    %c0_111 = arith.constant 0 : index
    %172 = vector.load %arg4[%c6_109, %c1_110, %c0_111] : memref<7x22x44xf32, #tpu.memory_space<vmem>>, vector<1x16x44xf32>
    %173 = vector.shape_cast %172 : vector<1x16x44xf32> to vector<16x44xf32>
    %174 = vector.broadcast %171 : f32 to vector<16x44xf32>
    %175 = arith.mulf %174, %173 : vector<16x44xf32>
    %176 = arith.addf %170, %175 : vector<16x44xf32>
    %c14 = arith.constant 14 : index
    %177 = memref.load %arg2[%c14] : memref<98xf32, #tpu.memory_space<smem>>
    %c0_112 = arith.constant 0 : index
    %c2_113 = arith.constant 2 : index
    %c0_114 = arith.constant 0 : index
    %178 = vector.load %arg4[%c0_112, %c2_113, %c0_114] : memref<7x22x44xf32, #tpu.memory_space<vmem>>, vector<1x16x44xf32>
    %179 = vector.shape_cast %178 : vector<1x16x44xf32> to vector<16x44xf32>
    %180 = vector.broadcast %177 : f32 to vector<16x44xf32>
    %181 = arith.mulf %180, %179 : vector<16x44xf32>
    %182 = arith.addf %176, %181 : vector<16x44xf32>
    %c15 = arith.constant 15 : index
    %183 = memref.load %arg2[%c15] : memref<98xf32, #tpu.memory_space<smem>>
    %c1_115 = arith.constant 1 : index
    %c2_116 = arith.constant 2 : index
    %c0_117 = arith.constant 0 : index
    %184 = vector.load %arg4[%c1_115, %c2_116, %c0_117] : memref<7x22x44xf32, #tpu.memory_space<vmem>>, vector<1x16x44xf32>
    %185 = vector.shape_cast %184 : vector<1x16x44xf32> to vector<16x44xf32>
    %186 = vector.broadcast %183 : f32 to vector<16x44xf32>
    %187 = arith.mulf %186, %185 : vector<16x44xf32>
    %188 = arith.addf %182, %187 : vector<16x44xf32>
    %c16 = arith.constant 16 : index
    %189 = memref.load %arg2[%c16] : memref<98xf32, #tpu.memory_space<smem>>
    %c2_118 = arith.constant 2 : index
    %c2_119 = arith.constant 2 : index
    %c0_120 = arith.constant 0 : index
    %190 = vector.load %arg4[%c2_118, %c2_119, %c0_120] : memref<7x22x44xf32, #tpu.memory_space<vmem>>, vector<1x16x44xf32>
    %191 = vector.shape_cast %190 : vector<1x16x44xf32> to vector<16x44xf32>
    %192 = vector.broadcast %189 : f32 to vector<16x44xf32>
    %193 = arith.mulf %192, %191 : vector<16x44xf32>
    %194 = arith.addf %188, %193 : vector<16x44xf32>
    %c17 = arith.constant 17 : index
    %195 = memref.load %arg2[%c17] : memref<98xf32, #tpu.memory_space<smem>>
    %c3_121 = arith.constant 3 : index
    %c2_122 = arith.constant 2 : index
    %c0_123 = arith.constant 0 : index
    %196 = vector.load %arg4[%c3_121, %c2_122, %c0_123] : memref<7x22x44xf32, #tpu.memory_space<vmem>>, vector<1x16x44xf32>
    %197 = vector.shape_cast %196 : vector<1x16x44xf32> to vector<16x44xf32>
    %198 = vector.broadcast %195 : f32 to vector<16x44xf32>
    %199 = arith.mulf %198, %197 : vector<16x44xf32>
    %200 = arith.addf %194, %199 : vector<16x44xf32>
    %c18 = arith.constant 18 : index
    %201 = memref.load %arg2[%c18] : memref<98xf32, #tpu.memory_space<smem>>
    %c4_124 = arith.constant 4 : index
    %c2_125 = arith.constant 2 : index
    %c0_126 = arith.constant 0 : index
    %202 = vector.load %arg4[%c4_124, %c2_125, %c0_126] : memref<7x22x44xf32, #tpu.memory_space<vmem>>, vector<1x16x44xf32>
    %203 = vector.shape_cast %202 : vector<1x16x44xf32> to vector<16x44xf32>
    %204 = vector.broadcast %201 : f32 to vector<16x44xf32>
    %205 = arith.mulf %204, %203 : vector<16x44xf32>
    %206 = arith.addf %200, %205 : vector<16x44xf32>
    %c19 = arith.constant 19 : index
    %207 = memref.load %arg2[%c19] : memref<98xf32, #tpu.memory_space<smem>>
    %c5_127 = arith.constant 5 : index
    %c2_128 = arith.constant 2 : index
    %c0_129 = arith.constant 0 : index
    %208 = vector.load %arg4[%c5_127, %c2_128, %c0_129] : memref<7x22x44xf32, #tpu.memory_space<vmem>>, vector<1x16x44xf32>
    %209 = vector.shape_cast %208 : vector<1x16x44xf32> to vector<16x44xf32>
    %210 = vector.broadcast %207 : f32 to vector<16x44xf32>
    %211 = arith.mulf %210, %209 : vector<16x44xf32>
    %212 = arith.addf %206, %211 : vector<16x44xf32>
    %c20 = arith.constant 20 : index
    %213 = memref.load %arg2[%c20] : memref<98xf32, #tpu.memory_space<smem>>
    %c6_130 = arith.constant 6 : index
    %c2_131 = arith.constant 2 : index
    %c0_132 = arith.constant 0 : index
    %214 = vector.load %arg4[%c6_130, %c2_131, %c0_132] : memref<7x22x44xf32, #tpu.memory_space<vmem>>, vector<1x16x44xf32>
    %215 = vector.shape_cast %214 : vector<1x16x44xf32> to vector<16x44xf32>
    %216 = vector.broadcast %213 : f32 to vector<16x44xf32>
    %217 = arith.mulf %216, %215 : vector<16x44xf32>
    %218 = arith.addf %212, %217 : vector<16x44xf32>
    %c21 = arith.constant 21 : index
    %219 = memref.load %arg2[%c21] : memref<98xf32, #tpu.memory_space<smem>>
    %c0_133 = arith.constant 0 : index
    %c3_134 = arith.constant 3 : index
    %c0_135 = arith.constant 0 : index
    %220 = vector.load %arg4[%c0_133, %c3_134, %c0_135] : memref<7x22x44xf32, #tpu.memory_space<vmem>>, vector<1x16x44xf32>
    %221 = vector.shape_cast %220 : vector<1x16x44xf32> to vector<16x44xf32>
    %222 = vector.broadcast %219 : f32 to vector<16x44xf32>
    %223 = arith.mulf %222, %221 : vector<16x44xf32>
    %224 = arith.addf %218, %223 : vector<16x44xf32>
    %c22 = arith.constant 22 : index
    %225 = memref.load %arg2[%c22] : memref<98xf32, #tpu.memory_space<smem>>
    %c1_136 = arith.constant 1 : index
    %c3_137 = arith.constant 3 : index
    %c0_138 = arith.constant 0 : index
    %226 = vector.load %arg4[%c1_136, %c3_137, %c0_138] : memref<7x22x44xf32, #tpu.memory_space<vmem>>, vector<1x16x44xf32>
    %227 = vector.shape_cast %226 : vector<1x16x44xf32> to vector<16x44xf32>
    %228 = vector.broadcast %225 : f32 to vector<16x44xf32>
    %229 = arith.mulf %228, %227 : vector<16x44xf32>
    %230 = arith.addf %224, %229 : vector<16x44xf32>
    %c23 = arith.constant 23 : index
    %231 = memref.load %arg2[%c23] : memref<98xf32, #tpu.memory_space<smem>>
    %c2_139 = arith.constant 2 : index
    %c3_140 = arith.constant 3 : index
    %c0_141 = arith.constant 0 : index
    %232 = vector.load %arg4[%c2_139, %c3_140, %c0_141] : memref<7x22x44xf32, #tpu.memory_space<vmem>>, vector<1x16x44xf32>
    %233 = vector.shape_cast %232 : vector<1x16x44xf32> to vector<16x44xf32>
    %234 = vector.broadcast %231 : f32 to vector<16x44xf32>
    %235 = arith.mulf %234, %233 : vector<16x44xf32>
    %236 = arith.addf %230, %235 : vector<16x44xf32>
    %c24 = arith.constant 24 : index
    %237 = memref.load %arg2[%c24] : memref<98xf32, #tpu.memory_space<smem>>
    %c3_142 = arith.constant 3 : index
    %c3_143 = arith.constant 3 : index
    %c0_144 = arith.constant 0 : index
    %238 = vector.load %arg4[%c3_142, %c3_143, %c0_144] : memref<7x22x44xf32, #tpu.memory_space<vmem>>, vector<1x16x44xf32>
    %239 = vector.shape_cast %238 : vector<1x16x44xf32> to vector<16x44xf32>
    %240 = vector.broadcast %237 : f32 to vector<16x44xf32>
    %241 = arith.mulf %240, %239 : vector<16x44xf32>
    %242 = arith.addf %236, %241 : vector<16x44xf32>
    %c25 = arith.constant 25 : index
    %243 = memref.load %arg2[%c25] : memref<98xf32, #tpu.memory_space<smem>>
    %c4_145 = arith.constant 4 : index
    %c3_146 = arith.constant 3 : index
    %c0_147 = arith.constant 0 : index
    %244 = vector.load %arg4[%c4_145, %c3_146, %c0_147] : memref<7x22x44xf32, #tpu.memory_space<vmem>>, vector<1x16x44xf32>
    %245 = vector.shape_cast %244 : vector<1x16x44xf32> to vector<16x44xf32>
    %246 = vector.broadcast %243 : f32 to vector<16x44xf32>
    %247 = arith.mulf %246, %245 : vector<16x44xf32>
    %248 = arith.addf %242, %247 : vector<16x44xf32>
    %c26 = arith.constant 26 : index
    %249 = memref.load %arg2[%c26] : memref<98xf32, #tpu.memory_space<smem>>
    %c5_148 = arith.constant 5 : index
    %c3_149 = arith.constant 3 : index
    %c0_150 = arith.constant 0 : index
    %250 = vector.load %arg4[%c5_148, %c3_149, %c0_150] : memref<7x22x44xf32, #tpu.memory_space<vmem>>, vector<1x16x44xf32>
    %251 = vector.shape_cast %250 : vector<1x16x44xf32> to vector<16x44xf32>
    %252 = vector.broadcast %249 : f32 to vector<16x44xf32>
    %253 = arith.mulf %252, %251 : vector<16x44xf32>
    %254 = arith.addf %248, %253 : vector<16x44xf32>
    %c27 = arith.constant 27 : index
    %255 = memref.load %arg2[%c27] : memref<98xf32, #tpu.memory_space<smem>>
    %c6_151 = arith.constant 6 : index
    %c3_152 = arith.constant 3 : index
    %c0_153 = arith.constant 0 : index
    %256 = vector.load %arg4[%c6_151, %c3_152, %c0_153] : memref<7x22x44xf32, #tpu.memory_space<vmem>>, vector<1x16x44xf32>
    %257 = vector.shape_cast %256 : vector<1x16x44xf32> to vector<16x44xf32>
    %258 = vector.broadcast %255 : f32 to vector<16x44xf32>
    %259 = arith.mulf %258, %257 : vector<16x44xf32>
    %260 = arith.addf %254, %259 : vector<16x44xf32>
    %c28 = arith.constant 28 : index
    %261 = memref.load %arg2[%c28] : memref<98xf32, #tpu.memory_space<smem>>
    %c0_154 = arith.constant 0 : index
    %c4_155 = arith.constant 4 : index
    %c0_156 = arith.constant 0 : index
    %262 = vector.load %arg4[%c0_154, %c4_155, %c0_156] : memref<7x22x44xf32, #tpu.memory_space<vmem>>, vector<1x16x44xf32>
    %263 = vector.shape_cast %262 : vector<1x16x44xf32> to vector<16x44xf32>
    %264 = vector.broadcast %261 : f32 to vector<16x44xf32>
    %265 = arith.mulf %264, %263 : vector<16x44xf32>
    %266 = arith.addf %260, %265 : vector<16x44xf32>
    %c29 = arith.constant 29 : index
    %267 = memref.load %arg2[%c29] : memref<98xf32, #tpu.memory_space<smem>>
    %c1_157 = arith.constant 1 : index
    %c4_158 = arith.constant 4 : index
    %c0_159 = arith.constant 0 : index
    %268 = vector.load %arg4[%c1_157, %c4_158, %c0_159] : memref<7x22x44xf32, #tpu.memory_space<vmem>>, vector<1x16x44xf32>
    %269 = vector.shape_cast %268 : vector<1x16x44xf32> to vector<16x44xf32>
    %270 = vector.broadcast %267 : f32 to vector<16x44xf32>
    %271 = arith.mulf %270, %269 : vector<16x44xf32>
    %272 = arith.addf %266, %271 : vector<16x44xf32>
    %c30 = arith.constant 30 : index
    %273 = memref.load %arg2[%c30] : memref<98xf32, #tpu.memory_space<smem>>
    %c2_160 = arith.constant 2 : index
    %c4_161 = arith.constant 4 : index
    %c0_162 = arith.constant 0 : index
    %274 = vector.load %arg4[%c2_160, %c4_161, %c0_162] : memref<7x22x44xf32, #tpu.memory_space<vmem>>, vector<1x16x44xf32>
    %275 = vector.shape_cast %274 : vector<1x16x44xf32> to vector<16x44xf32>
    %276 = vector.broadcast %273 : f32 to vector<16x44xf32>
    %277 = arith.mulf %276, %275 : vector<16x44xf32>
    %278 = arith.addf %272, %277 : vector<16x44xf32>
    %c31 = arith.constant 31 : index
    %279 = memref.load %arg2[%c31] : memref<98xf32, #tpu.memory_space<smem>>
    %c3_163 = arith.constant 3 : index
    %c4_164 = arith.constant 4 : index
    %c0_165 = arith.constant 0 : index
    %280 = vector.load %arg4[%c3_163, %c4_164, %c0_165] : memref<7x22x44xf32, #tpu.memory_space<vmem>>, vector<1x16x44xf32>
    %281 = vector.shape_cast %280 : vector<1x16x44xf32> to vector<16x44xf32>
    %282 = vector.broadcast %279 : f32 to vector<16x44xf32>
    %283 = arith.mulf %282, %281 : vector<16x44xf32>
    %284 = arith.addf %278, %283 : vector<16x44xf32>
    %c32 = arith.constant 32 : index
    %285 = memref.load %arg2[%c32] : memref<98xf32, #tpu.memory_space<smem>>
    %c4_166 = arith.constant 4 : index
    %c4_167 = arith.constant 4 : index
    %c0_168 = arith.constant 0 : index
    %286 = vector.load %arg4[%c4_166, %c4_167, %c0_168] : memref<7x22x44xf32, #tpu.memory_space<vmem>>, vector<1x16x44xf32>
    %287 = vector.shape_cast %286 : vector<1x16x44xf32> to vector<16x44xf32>
    %288 = vector.broadcast %285 : f32 to vector<16x44xf32>
    %289 = arith.mulf %288, %287 : vector<16x44xf32>
    %290 = arith.addf %284, %289 : vector<16x44xf32>
    %c33 = arith.constant 33 : index
    %291 = memref.load %arg2[%c33] : memref<98xf32, #tpu.memory_space<smem>>
    %c5_169 = arith.constant 5 : index
    %c4_170 = arith.constant 4 : index
    %c0_171 = arith.constant 0 : index
    %292 = vector.load %arg4[%c5_169, %c4_170, %c0_171] : memref<7x22x44xf32, #tpu.memory_space<vmem>>, vector<1x16x44xf32>
    %293 = vector.shape_cast %292 : vector<1x16x44xf32> to vector<16x44xf32>
    %294 = vector.broadcast %291 : f32 to vector<16x44xf32>
    %295 = arith.mulf %294, %293 : vector<16x44xf32>
    %296 = arith.addf %290, %295 : vector<16x44xf32>
    %c34 = arith.constant 34 : index
    %297 = memref.load %arg2[%c34] : memref<98xf32, #tpu.memory_space<smem>>
    %c6_172 = arith.constant 6 : index
    %c4_173 = arith.constant 4 : index
    %c0_174 = arith.constant 0 : index
    %298 = vector.load %arg4[%c6_172, %c4_173, %c0_174] : memref<7x22x44xf32, #tpu.memory_space<vmem>>, vector<1x16x44xf32>
    %299 = vector.shape_cast %298 : vector<1x16x44xf32> to vector<16x44xf32>
    %300 = vector.broadcast %297 : f32 to vector<16x44xf32>
    %301 = arith.mulf %300, %299 : vector<16x44xf32>
    %302 = arith.addf %296, %301 : vector<16x44xf32>
    %c35 = arith.constant 35 : index
    %303 = memref.load %arg2[%c35] : memref<98xf32, #tpu.memory_space<smem>>
    %c0_175 = arith.constant 0 : index
    %c5_176 = arith.constant 5 : index
    %c0_177 = arith.constant 0 : index
    %304 = vector.load %arg4[%c0_175, %c5_176, %c0_177] : memref<7x22x44xf32, #tpu.memory_space<vmem>>, vector<1x16x44xf32>
    %305 = vector.shape_cast %304 : vector<1x16x44xf32> to vector<16x44xf32>
    %306 = vector.broadcast %303 : f32 to vector<16x44xf32>
    %307 = arith.mulf %306, %305 : vector<16x44xf32>
    %308 = arith.addf %302, %307 : vector<16x44xf32>
    %c36 = arith.constant 36 : index
    %309 = memref.load %arg2[%c36] : memref<98xf32, #tpu.memory_space<smem>>
    %c1_178 = arith.constant 1 : index
    %c5_179 = arith.constant 5 : index
    %c0_180 = arith.constant 0 : index
    %310 = vector.load %arg4[%c1_178, %c5_179, %c0_180] : memref<7x22x44xf32, #tpu.memory_space<vmem>>, vector<1x16x44xf32>
    %311 = vector.shape_cast %310 : vector<1x16x44xf32> to vector<16x44xf32>
    %312 = vector.broadcast %309 : f32 to vector<16x44xf32>
    %313 = arith.mulf %312, %311 : vector<16x44xf32>
    %314 = arith.addf %308, %313 : vector<16x44xf32>
    %c37 = arith.constant 37 : index
    %315 = memref.load %arg2[%c37] : memref<98xf32, #tpu.memory_space<smem>>
    %c2_181 = arith.constant 2 : index
    %c5_182 = arith.constant 5 : index
    %c0_183 = arith.constant 0 : index
    %316 = vector.load %arg4[%c2_181, %c5_182, %c0_183] : memref<7x22x44xf32, #tpu.memory_space<vmem>>, vector<1x16x44xf32>
    %317 = vector.shape_cast %316 : vector<1x16x44xf32> to vector<16x44xf32>
    %318 = vector.broadcast %315 : f32 to vector<16x44xf32>
    %319 = arith.mulf %318, %317 : vector<16x44xf32>
    %320 = arith.addf %314, %319 : vector<16x44xf32>
    %c38 = arith.constant 38 : index
    %321 = memref.load %arg2[%c38] : memref<98xf32, #tpu.memory_space<smem>>
    %c3_184 = arith.constant 3 : index
    %c5_185 = arith.constant 5 : index
    %c0_186 = arith.constant 0 : index
    %322 = vector.load %arg4[%c3_184, %c5_185, %c0_186] : memref<7x22x44xf32, #tpu.memory_space<vmem>>, vector<1x16x44xf32>
    %323 = vector.shape_cast %322 : vector<1x16x44xf32> to vector<16x44xf32>
    %324 = vector.broadcast %321 : f32 to vector<16x44xf32>
    %325 = arith.mulf %324, %323 : vector<16x44xf32>
    %326 = arith.addf %320, %325 : vector<16x44xf32>
    %c39 = arith.constant 39 : index
    %327 = memref.load %arg2[%c39] : memref<98xf32, #tpu.memory_space<smem>>
    %c4_187 = arith.constant 4 : index
    %c5_188 = arith.constant 5 : index
    %c0_189 = arith.constant 0 : index
    %328 = vector.load %arg4[%c4_187, %c5_188, %c0_189] : memref<7x22x44xf32, #tpu.memory_space<vmem>>, vector<1x16x44xf32>
    %329 = vector.shape_cast %328 : vector<1x16x44xf32> to vector<16x44xf32>
    %330 = vector.broadcast %327 : f32 to vector<16x44xf32>
    %331 = arith.mulf %330, %329 : vector<16x44xf32>
    %332 = arith.addf %326, %331 : vector<16x44xf32>
    %c40 = arith.constant 40 : index
    %333 = memref.load %arg2[%c40] : memref<98xf32, #tpu.memory_space<smem>>
    %c5_190 = arith.constant 5 : index
    %c5_191 = arith.constant 5 : index
    %c0_192 = arith.constant 0 : index
    %334 = vector.load %arg4[%c5_190, %c5_191, %c0_192] : memref<7x22x44xf32, #tpu.memory_space<vmem>>, vector<1x16x44xf32>
    %335 = vector.shape_cast %334 : vector<1x16x44xf32> to vector<16x44xf32>
    %336 = vector.broadcast %333 : f32 to vector<16x44xf32>
    %337 = arith.mulf %336, %335 : vector<16x44xf32>
    %338 = arith.addf %332, %337 : vector<16x44xf32>
    %c41 = arith.constant 41 : index
    %339 = memref.load %arg2[%c41] : memref<98xf32, #tpu.memory_space<smem>>
    %c6_193 = arith.constant 6 : index
    %c5_194 = arith.constant 5 : index
    %c0_195 = arith.constant 0 : index
    %340 = vector.load %arg4[%c6_193, %c5_194, %c0_195] : memref<7x22x44xf32, #tpu.memory_space<vmem>>, vector<1x16x44xf32>
    %341 = vector.shape_cast %340 : vector<1x16x44xf32> to vector<16x44xf32>
    %342 = vector.broadcast %339 : f32 to vector<16x44xf32>
    %343 = arith.mulf %342, %341 : vector<16x44xf32>
    %344 = arith.addf %338, %343 : vector<16x44xf32>
    %c42 = arith.constant 42 : index
    %345 = memref.load %arg2[%c42] : memref<98xf32, #tpu.memory_space<smem>>
    %c0_196 = arith.constant 0 : index
    %c6_197 = arith.constant 6 : index
    %c0_198 = arith.constant 0 : index
    %346 = vector.load %arg4[%c0_196, %c6_197, %c0_198] : memref<7x22x44xf32, #tpu.memory_space<vmem>>, vector<1x16x44xf32>
    %347 = vector.shape_cast %346 : vector<1x16x44xf32> to vector<16x44xf32>
    %348 = vector.broadcast %345 : f32 to vector<16x44xf32>
    %349 = arith.mulf %348, %347 : vector<16x44xf32>
    %350 = arith.addf %344, %349 : vector<16x44xf32>
    %c43 = arith.constant 43 : index
    %351 = memref.load %arg2[%c43] : memref<98xf32, #tpu.memory_space<smem>>
    %c1_199 = arith.constant 1 : index
    %c6_200 = arith.constant 6 : index
    %c0_201 = arith.constant 0 : index
    %352 = vector.load %arg4[%c1_199, %c6_200, %c0_201] : memref<7x22x44xf32, #tpu.memory_space<vmem>>, vector<1x16x44xf32>
    %353 = vector.shape_cast %352 : vector<1x16x44xf32> to vector<16x44xf32>
    %354 = vector.broadcast %351 : f32 to vector<16x44xf32>
    %355 = arith.mulf %354, %353 : vector<16x44xf32>
    %356 = arith.addf %350, %355 : vector<16x44xf32>
    %c44 = arith.constant 44 : index
    %357 = memref.load %arg2[%c44] : memref<98xf32, #tpu.memory_space<smem>>
    %c2_202 = arith.constant 2 : index
    %c6_203 = arith.constant 6 : index
    %c0_204 = arith.constant 0 : index
    %358 = vector.load %arg4[%c2_202, %c6_203, %c0_204] : memref<7x22x44xf32, #tpu.memory_space<vmem>>, vector<1x16x44xf32>
    %359 = vector.shape_cast %358 : vector<1x16x44xf32> to vector<16x44xf32>
    %360 = vector.broadcast %357 : f32 to vector<16x44xf32>
    %361 = arith.mulf %360, %359 : vector<16x44xf32>
    %362 = arith.addf %356, %361 : vector<16x44xf32>
    %c45 = arith.constant 45 : index
    %363 = memref.load %arg2[%c45] : memref<98xf32, #tpu.memory_space<smem>>
    %c3_205 = arith.constant 3 : index
    %c6_206 = arith.constant 6 : index
    %c0_207 = arith.constant 0 : index
    %364 = vector.load %arg4[%c3_205, %c6_206, %c0_207] : memref<7x22x44xf32, #tpu.memory_space<vmem>>, vector<1x16x44xf32>
    %365 = vector.shape_cast %364 : vector<1x16x44xf32> to vector<16x44xf32>
    %366 = vector.broadcast %363 : f32 to vector<16x44xf32>
    %367 = arith.mulf %366, %365 : vector<16x44xf32>
    %368 = arith.addf %362, %367 : vector<16x44xf32>
    %c46 = arith.constant 46 : index
    %369 = memref.load %arg2[%c46] : memref<98xf32, #tpu.memory_space<smem>>
    %c4_208 = arith.constant 4 : index
    %c6_209 = arith.constant 6 : index
    %c0_210 = arith.constant 0 : index
    %370 = vector.load %arg4[%c4_208, %c6_209, %c0_210] : memref<7x22x44xf32, #tpu.memory_space<vmem>>, vector<1x16x44xf32>
    %371 = vector.shape_cast %370 : vector<1x16x44xf32> to vector<16x44xf32>
    %372 = vector.broadcast %369 : f32 to vector<16x44xf32>
    %373 = arith.mulf %372, %371 : vector<16x44xf32>
    %374 = arith.addf %368, %373 : vector<16x44xf32>
    %c47 = arith.constant 47 : index
    %375 = memref.load %arg2[%c47] : memref<98xf32, #tpu.memory_space<smem>>
    %c5_211 = arith.constant 5 : index
    %c6_212 = arith.constant 6 : index
    %c0_213 = arith.constant 0 : index
    %376 = vector.load %arg4[%c5_211, %c6_212, %c0_213] : memref<7x22x44xf32, #tpu.memory_space<vmem>>, vector<1x16x44xf32>
    %377 = vector.shape_cast %376 : vector<1x16x44xf32> to vector<16x44xf32>
    %378 = vector.broadcast %375 : f32 to vector<16x44xf32>
    %379 = arith.mulf %378, %377 : vector<16x44xf32>
    %380 = arith.addf %374, %379 : vector<16x44xf32>
    %c48 = arith.constant 48 : index
    %381 = memref.load %arg2[%c48] : memref<98xf32, #tpu.memory_space<smem>>
    %c6_214 = arith.constant 6 : index
    %c6_215 = arith.constant 6 : index
    %c0_216 = arith.constant 0 : index
    %382 = vector.load %arg4[%c6_214, %c6_215, %c0_216] : memref<7x22x44xf32, #tpu.memory_space<vmem>>, vector<1x16x44xf32>
    %383 = vector.shape_cast %382 : vector<1x16x44xf32> to vector<16x44xf32>
    %384 = vector.broadcast %381 : f32 to vector<16x44xf32>
    %385 = arith.mulf %384, %383 : vector<16x44xf32>
    %386 = arith.addf %380, %385 : vector<16x44xf32>
    %c49 = arith.constant 49 : index
    %387 = memref.load %arg2[%c49] : memref<98xf32, #tpu.memory_space<smem>>
    %c0_217 = arith.constant 0 : index
    %c0_218 = arith.constant 0 : index
    %c0_219 = arith.constant 0 : index
    %388 = vector.load %arg5[%c0_217, %c0_218, %c0_219] : memref<7x22x44xf32, #tpu.memory_space<vmem>>, vector<1x16x44xf32>
    %389 = vector.shape_cast %388 : vector<1x16x44xf32> to vector<16x44xf32>
    %390 = vector.broadcast %387 : f32 to vector<16x44xf32>
    %391 = arith.mulf %390, %389 : vector<16x44xf32>
    %392 = arith.addf %386, %391 : vector<16x44xf32>
    %c50 = arith.constant 50 : index
    %393 = memref.load %arg2[%c50] : memref<98xf32, #tpu.memory_space<smem>>
    %c1_220 = arith.constant 1 : index
    %c0_221 = arith.constant 0 : index
    %c0_222 = arith.constant 0 : index
    %394 = vector.load %arg5[%c1_220, %c0_221, %c0_222] : memref<7x22x44xf32, #tpu.memory_space<vmem>>, vector<1x16x44xf32>
    %395 = vector.shape_cast %394 : vector<1x16x44xf32> to vector<16x44xf32>
    %396 = vector.broadcast %393 : f32 to vector<16x44xf32>
    %397 = arith.mulf %396, %395 : vector<16x44xf32>
    %398 = arith.addf %392, %397 : vector<16x44xf32>
    %c51 = arith.constant 51 : index
    %399 = memref.load %arg2[%c51] : memref<98xf32, #tpu.memory_space<smem>>
    %c2_223 = arith.constant 2 : index
    %c0_224 = arith.constant 0 : index
    %c0_225 = arith.constant 0 : index
    %400 = vector.load %arg5[%c2_223, %c0_224, %c0_225] : memref<7x22x44xf32, #tpu.memory_space<vmem>>, vector<1x16x44xf32>
    %401 = vector.shape_cast %400 : vector<1x16x44xf32> to vector<16x44xf32>
    %402 = vector.broadcast %399 : f32 to vector<16x44xf32>
    %403 = arith.mulf %402, %401 : vector<16x44xf32>
    %404 = arith.addf %398, %403 : vector<16x44xf32>
    %c52 = arith.constant 52 : index
    %405 = memref.load %arg2[%c52] : memref<98xf32, #tpu.memory_space<smem>>
    %c3_226 = arith.constant 3 : index
    %c0_227 = arith.constant 0 : index
    %c0_228 = arith.constant 0 : index
    %406 = vector.load %arg5[%c3_226, %c0_227, %c0_228] : memref<7x22x44xf32, #tpu.memory_space<vmem>>, vector<1x16x44xf32>
    %407 = vector.shape_cast %406 : vector<1x16x44xf32> to vector<16x44xf32>
    %408 = vector.broadcast %405 : f32 to vector<16x44xf32>
    %409 = arith.mulf %408, %407 : vector<16x44xf32>
    %410 = arith.addf %404, %409 : vector<16x44xf32>
    %c53 = arith.constant 53 : index
    %411 = memref.load %arg2[%c53] : memref<98xf32, #tpu.memory_space<smem>>
    %c4_229 = arith.constant 4 : index
    %c0_230 = arith.constant 0 : index
    %c0_231 = arith.constant 0 : index
    %412 = vector.load %arg5[%c4_229, %c0_230, %c0_231] : memref<7x22x44xf32, #tpu.memory_space<vmem>>, vector<1x16x44xf32>
    %413 = vector.shape_cast %412 : vector<1x16x44xf32> to vector<16x44xf32>
    %414 = vector.broadcast %411 : f32 to vector<16x44xf32>
    %415 = arith.mulf %414, %413 : vector<16x44xf32>
    %416 = arith.addf %410, %415 : vector<16x44xf32>
    %c54 = arith.constant 54 : index
    %417 = memref.load %arg2[%c54] : memref<98xf32, #tpu.memory_space<smem>>
    %c5_232 = arith.constant 5 : index
    %c0_233 = arith.constant 0 : index
    %c0_234 = arith.constant 0 : index
    %418 = vector.load %arg5[%c5_232, %c0_233, %c0_234] : memref<7x22x44xf32, #tpu.memory_space<vmem>>, vector<1x16x44xf32>
    %419 = vector.shape_cast %418 : vector<1x16x44xf32> to vector<16x44xf32>
    %420 = vector.broadcast %417 : f32 to vector<16x44xf32>
    %421 = arith.mulf %420, %419 : vector<16x44xf32>
    %422 = arith.addf %416, %421 : vector<16x44xf32>
    %c55 = arith.constant 55 : index
    %423 = memref.load %arg2[%c55] : memref<98xf32, #tpu.memory_space<smem>>
    %c6_235 = arith.constant 6 : index
    %c0_236 = arith.constant 0 : index
    %c0_237 = arith.constant 0 : index
    %424 = vector.load %arg5[%c6_235, %c0_236, %c0_237] : memref<7x22x44xf32, #tpu.memory_space<vmem>>, vector<1x16x44xf32>
    %425 = vector.shape_cast %424 : vector<1x16x44xf32> to vector<16x44xf32>
    %426 = vector.broadcast %423 : f32 to vector<16x44xf32>
    %427 = arith.mulf %426, %425 : vector<16x44xf32>
    %428 = arith.addf %422, %427 : vector<16x44xf32>
    %c56 = arith.constant 56 : index
    %429 = memref.load %arg2[%c56] : memref<98xf32, #tpu.memory_space<smem>>
    %c0_238 = arith.constant 0 : index
    %c1_239 = arith.constant 1 : index
    %c0_240 = arith.constant 0 : index
    %430 = vector.load %arg5[%c0_238, %c1_239, %c0_240] : memref<7x22x44xf32, #tpu.memory_space<vmem>>, vector<1x16x44xf32>
    %431 = vector.shape_cast %430 : vector<1x16x44xf32> to vector<16x44xf32>
    %432 = vector.broadcast %429 : f32 to vector<16x44xf32>
    %433 = arith.mulf %432, %431 : vector<16x44xf32>
    %434 = arith.addf %428, %433 : vector<16x44xf32>
    %c57 = arith.constant 57 : index
    %435 = memref.load %arg2[%c57] : memref<98xf32, #tpu.memory_space<smem>>
    %c1_241 = arith.constant 1 : index
    %c1_242 = arith.constant 1 : index
    %c0_243 = arith.constant 0 : index
    %436 = vector.load %arg5[%c1_241, %c1_242, %c0_243] : memref<7x22x44xf32, #tpu.memory_space<vmem>>, vector<1x16x44xf32>
    %437 = vector.shape_cast %436 : vector<1x16x44xf32> to vector<16x44xf32>
    %438 = vector.broadcast %435 : f32 to vector<16x44xf32>
    %439 = arith.mulf %438, %437 : vector<16x44xf32>
    %440 = arith.addf %434, %439 : vector<16x44xf32>
    %c58 = arith.constant 58 : index
    %441 = memref.load %arg2[%c58] : memref<98xf32, #tpu.memory_space<smem>>
    %c2_244 = arith.constant 2 : index
    %c1_245 = arith.constant 1 : index
    %c0_246 = arith.constant 0 : index
    %442 = vector.load %arg5[%c2_244, %c1_245, %c0_246] : memref<7x22x44xf32, #tpu.memory_space<vmem>>, vector<1x16x44xf32>
    %443 = vector.shape_cast %442 : vector<1x16x44xf32> to vector<16x44xf32>
    %444 = vector.broadcast %441 : f32 to vector<16x44xf32>
    %445 = arith.mulf %444, %443 : vector<16x44xf32>
    %446 = arith.addf %440, %445 : vector<16x44xf32>
    %c59 = arith.constant 59 : index
    %447 = memref.load %arg2[%c59] : memref<98xf32, #tpu.memory_space<smem>>
    %c3_247 = arith.constant 3 : index
    %c1_248 = arith.constant 1 : index
    %c0_249 = arith.constant 0 : index
    %448 = vector.load %arg5[%c3_247, %c1_248, %c0_249] : memref<7x22x44xf32, #tpu.memory_space<vmem>>, vector<1x16x44xf32>
    %449 = vector.shape_cast %448 : vector<1x16x44xf32> to vector<16x44xf32>
    %450 = vector.broadcast %447 : f32 to vector<16x44xf32>
    %451 = arith.mulf %450, %449 : vector<16x44xf32>
    %452 = arith.addf %446, %451 : vector<16x44xf32>
    %c60 = arith.constant 60 : index
    %453 = memref.load %arg2[%c60] : memref<98xf32, #tpu.memory_space<smem>>
    %c4_250 = arith.constant 4 : index
    %c1_251 = arith.constant 1 : index
    %c0_252 = arith.constant 0 : index
    %454 = vector.load %arg5[%c4_250, %c1_251, %c0_252] : memref<7x22x44xf32, #tpu.memory_space<vmem>>, vector<1x16x44xf32>
    %455 = vector.shape_cast %454 : vector<1x16x44xf32> to vector<16x44xf32>
    %456 = vector.broadcast %453 : f32 to vector<16x44xf32>
    %457 = arith.mulf %456, %455 : vector<16x44xf32>
    %458 = arith.addf %452, %457 : vector<16x44xf32>
    %c61 = arith.constant 61 : index
    %459 = memref.load %arg2[%c61] : memref<98xf32, #tpu.memory_space<smem>>
    %c5_253 = arith.constant 5 : index
    %c1_254 = arith.constant 1 : index
    %c0_255 = arith.constant 0 : index
    %460 = vector.load %arg5[%c5_253, %c1_254, %c0_255] : memref<7x22x44xf32, #tpu.memory_space<vmem>>, vector<1x16x44xf32>
    %461 = vector.shape_cast %460 : vector<1x16x44xf32> to vector<16x44xf32>
    %462 = vector.broadcast %459 : f32 to vector<16x44xf32>
    %463 = arith.mulf %462, %461 : vector<16x44xf32>
    %464 = arith.addf %458, %463 : vector<16x44xf32>
    %c62 = arith.constant 62 : index
    %465 = memref.load %arg2[%c62] : memref<98xf32, #tpu.memory_space<smem>>
    %c6_256 = arith.constant 6 : index
    %c1_257 = arith.constant 1 : index
    %c0_258 = arith.constant 0 : index
    %466 = vector.load %arg5[%c6_256, %c1_257, %c0_258] : memref<7x22x44xf32, #tpu.memory_space<vmem>>, vector<1x16x44xf32>
    %467 = vector.shape_cast %466 : vector<1x16x44xf32> to vector<16x44xf32>
    %468 = vector.broadcast %465 : f32 to vector<16x44xf32>
    %469 = arith.mulf %468, %467 : vector<16x44xf32>
    %470 = arith.addf %464, %469 : vector<16x44xf32>
    %c63 = arith.constant 63 : index
    %471 = memref.load %arg2[%c63] : memref<98xf32, #tpu.memory_space<smem>>
    %c0_259 = arith.constant 0 : index
    %c2_260 = arith.constant 2 : index
    %c0_261 = arith.constant 0 : index
    %472 = vector.load %arg5[%c0_259, %c2_260, %c0_261] : memref<7x22x44xf32, #tpu.memory_space<vmem>>, vector<1x16x44xf32>
    %473 = vector.shape_cast %472 : vector<1x16x44xf32> to vector<16x44xf32>
    %474 = vector.broadcast %471 : f32 to vector<16x44xf32>
    %475 = arith.mulf %474, %473 : vector<16x44xf32>
    %476 = arith.addf %470, %475 : vector<16x44xf32>
    %c64 = arith.constant 64 : index
    %477 = memref.load %arg2[%c64] : memref<98xf32, #tpu.memory_space<smem>>
    %c1_262 = arith.constant 1 : index
    %c2_263 = arith.constant 2 : index
    %c0_264 = arith.constant 0 : index
    %478 = vector.load %arg5[%c1_262, %c2_263, %c0_264] : memref<7x22x44xf32, #tpu.memory_space<vmem>>, vector<1x16x44xf32>
    %479 = vector.shape_cast %478 : vector<1x16x44xf32> to vector<16x44xf32>
    %480 = vector.broadcast %477 : f32 to vector<16x44xf32>
    %481 = arith.mulf %480, %479 : vector<16x44xf32>
    %482 = arith.addf %476, %481 : vector<16x44xf32>
    %c65 = arith.constant 65 : index
    %483 = memref.load %arg2[%c65] : memref<98xf32, #tpu.memory_space<smem>>
    %c2_265 = arith.constant 2 : index
    %c2_266 = arith.constant 2 : index
    %c0_267 = arith.constant 0 : index
    %484 = vector.load %arg5[%c2_265, %c2_266, %c0_267] : memref<7x22x44xf32, #tpu.memory_space<vmem>>, vector<1x16x44xf32>
    %485 = vector.shape_cast %484 : vector<1x16x44xf32> to vector<16x44xf32>
    %486 = vector.broadcast %483 : f32 to vector<16x44xf32>
    %487 = arith.mulf %486, %485 : vector<16x44xf32>
    %488 = arith.addf %482, %487 : vector<16x44xf32>
    %c66 = arith.constant 66 : index
    %489 = memref.load %arg2[%c66] : memref<98xf32, #tpu.memory_space<smem>>
    %c3_268 = arith.constant 3 : index
    %c2_269 = arith.constant 2 : index
    %c0_270 = arith.constant 0 : index
    %490 = vector.load %arg5[%c3_268, %c2_269, %c0_270] : memref<7x22x44xf32, #tpu.memory_space<vmem>>, vector<1x16x44xf32>
    %491 = vector.shape_cast %490 : vector<1x16x44xf32> to vector<16x44xf32>
    %492 = vector.broadcast %489 : f32 to vector<16x44xf32>
    %493 = arith.mulf %492, %491 : vector<16x44xf32>
    %494 = arith.addf %488, %493 : vector<16x44xf32>
    %c67 = arith.constant 67 : index
    %495 = memref.load %arg2[%c67] : memref<98xf32, #tpu.memory_space<smem>>
    %c4_271 = arith.constant 4 : index
    %c2_272 = arith.constant 2 : index
    %c0_273 = arith.constant 0 : index
    %496 = vector.load %arg5[%c4_271, %c2_272, %c0_273] : memref<7x22x44xf32, #tpu.memory_space<vmem>>, vector<1x16x44xf32>
    %497 = vector.shape_cast %496 : vector<1x16x44xf32> to vector<16x44xf32>
    %498 = vector.broadcast %495 : f32 to vector<16x44xf32>
    %499 = arith.mulf %498, %497 : vector<16x44xf32>
    %500 = arith.addf %494, %499 : vector<16x44xf32>
    %c68 = arith.constant 68 : index
    %501 = memref.load %arg2[%c68] : memref<98xf32, #tpu.memory_space<smem>>
    %c5_274 = arith.constant 5 : index
    %c2_275 = arith.constant 2 : index
    %c0_276 = arith.constant 0 : index
    %502 = vector.load %arg5[%c5_274, %c2_275, %c0_276] : memref<7x22x44xf32, #tpu.memory_space<vmem>>, vector<1x16x44xf32>
    %503 = vector.shape_cast %502 : vector<1x16x44xf32> to vector<16x44xf32>
    %504 = vector.broadcast %501 : f32 to vector<16x44xf32>
    %505 = arith.mulf %504, %503 : vector<16x44xf32>
    %506 = arith.addf %500, %505 : vector<16x44xf32>
    %c69 = arith.constant 69 : index
    %507 = memref.load %arg2[%c69] : memref<98xf32, #tpu.memory_space<smem>>
    %c6_277 = arith.constant 6 : index
    %c2_278 = arith.constant 2 : index
    %c0_279 = arith.constant 0 : index
    %508 = vector.load %arg5[%c6_277, %c2_278, %c0_279] : memref<7x22x44xf32, #tpu.memory_space<vmem>>, vector<1x16x44xf32>
    %509 = vector.shape_cast %508 : vector<1x16x44xf32> to vector<16x44xf32>
    %510 = vector.broadcast %507 : f32 to vector<16x44xf32>
    %511 = arith.mulf %510, %509 : vector<16x44xf32>
    %512 = arith.addf %506, %511 : vector<16x44xf32>
    %c70 = arith.constant 70 : index
    %513 = memref.load %arg2[%c70] : memref<98xf32, #tpu.memory_space<smem>>
    %c0_280 = arith.constant 0 : index
    %c3_281 = arith.constant 3 : index
    %c0_282 = arith.constant 0 : index
    %514 = vector.load %arg5[%c0_280, %c3_281, %c0_282] : memref<7x22x44xf32, #tpu.memory_space<vmem>>, vector<1x16x44xf32>
    %515 = vector.shape_cast %514 : vector<1x16x44xf32> to vector<16x44xf32>
    %516 = vector.broadcast %513 : f32 to vector<16x44xf32>
    %517 = arith.mulf %516, %515 : vector<16x44xf32>
    %518 = arith.addf %512, %517 : vector<16x44xf32>
    %c71 = arith.constant 71 : index
    %519 = memref.load %arg2[%c71] : memref<98xf32, #tpu.memory_space<smem>>
    %c1_283 = arith.constant 1 : index
    %c3_284 = arith.constant 3 : index
    %c0_285 = arith.constant 0 : index
    %520 = vector.load %arg5[%c1_283, %c3_284, %c0_285] : memref<7x22x44xf32, #tpu.memory_space<vmem>>, vector<1x16x44xf32>
    %521 = vector.shape_cast %520 : vector<1x16x44xf32> to vector<16x44xf32>
    %522 = vector.broadcast %519 : f32 to vector<16x44xf32>
    %523 = arith.mulf %522, %521 : vector<16x44xf32>
    %524 = arith.addf %518, %523 : vector<16x44xf32>
    %c72 = arith.constant 72 : index
    %525 = memref.load %arg2[%c72] : memref<98xf32, #tpu.memory_space<smem>>
    %c2_286 = arith.constant 2 : index
    %c3_287 = arith.constant 3 : index
    %c0_288 = arith.constant 0 : index
    %526 = vector.load %arg5[%c2_286, %c3_287, %c0_288] : memref<7x22x44xf32, #tpu.memory_space<vmem>>, vector<1x16x44xf32>
    %527 = vector.shape_cast %526 : vector<1x16x44xf32> to vector<16x44xf32>
    %528 = vector.broadcast %525 : f32 to vector<16x44xf32>
    %529 = arith.mulf %528, %527 : vector<16x44xf32>
    %530 = arith.addf %524, %529 : vector<16x44xf32>
    %c73 = arith.constant 73 : index
    %531 = memref.load %arg2[%c73] : memref<98xf32, #tpu.memory_space<smem>>
    %c3_289 = arith.constant 3 : index
    %c3_290 = arith.constant 3 : index
    %c0_291 = arith.constant 0 : index
    %532 = vector.load %arg5[%c3_289, %c3_290, %c0_291] : memref<7x22x44xf32, #tpu.memory_space<vmem>>, vector<1x16x44xf32>
    %533 = vector.shape_cast %532 : vector<1x16x44xf32> to vector<16x44xf32>
    %534 = vector.broadcast %531 : f32 to vector<16x44xf32>
    %535 = arith.mulf %534, %533 : vector<16x44xf32>
    %536 = arith.addf %530, %535 : vector<16x44xf32>
    %c74 = arith.constant 74 : index
    %537 = memref.load %arg2[%c74] : memref<98xf32, #tpu.memory_space<smem>>
    %c4_292 = arith.constant 4 : index
    %c3_293 = arith.constant 3 : index
    %c0_294 = arith.constant 0 : index
    %538 = vector.load %arg5[%c4_292, %c3_293, %c0_294] : memref<7x22x44xf32, #tpu.memory_space<vmem>>, vector<1x16x44xf32>
    %539 = vector.shape_cast %538 : vector<1x16x44xf32> to vector<16x44xf32>
    %540 = vector.broadcast %537 : f32 to vector<16x44xf32>
    %541 = arith.mulf %540, %539 : vector<16x44xf32>
    %542 = arith.addf %536, %541 : vector<16x44xf32>
    %c75 = arith.constant 75 : index
    %543 = memref.load %arg2[%c75] : memref<98xf32, #tpu.memory_space<smem>>
    %c5_295 = arith.constant 5 : index
    %c3_296 = arith.constant 3 : index
    %c0_297 = arith.constant 0 : index
    %544 = vector.load %arg5[%c5_295, %c3_296, %c0_297] : memref<7x22x44xf32, #tpu.memory_space<vmem>>, vector<1x16x44xf32>
    %545 = vector.shape_cast %544 : vector<1x16x44xf32> to vector<16x44xf32>
    %546 = vector.broadcast %543 : f32 to vector<16x44xf32>
    %547 = arith.mulf %546, %545 : vector<16x44xf32>
    %548 = arith.addf %542, %547 : vector<16x44xf32>
    %c76 = arith.constant 76 : index
    %549 = memref.load %arg2[%c76] : memref<98xf32, #tpu.memory_space<smem>>
    %c6_298 = arith.constant 6 : index
    %c3_299 = arith.constant 3 : index
    %c0_300 = arith.constant 0 : index
    %550 = vector.load %arg5[%c6_298, %c3_299, %c0_300] : memref<7x22x44xf32, #tpu.memory_space<vmem>>, vector<1x16x44xf32>
    %551 = vector.shape_cast %550 : vector<1x16x44xf32> to vector<16x44xf32>
    %552 = vector.broadcast %549 : f32 to vector<16x44xf32>
    %553 = arith.mulf %552, %551 : vector<16x44xf32>
    %554 = arith.addf %548, %553 : vector<16x44xf32>
    %c77 = arith.constant 77 : index
    %555 = memref.load %arg2[%c77] : memref<98xf32, #tpu.memory_space<smem>>
    %c0_301 = arith.constant 0 : index
    %c4_302 = arith.constant 4 : index
    %c0_303 = arith.constant 0 : index
    %556 = vector.load %arg5[%c0_301, %c4_302, %c0_303] : memref<7x22x44xf32, #tpu.memory_space<vmem>>, vector<1x16x44xf32>
    %557 = vector.shape_cast %556 : vector<1x16x44xf32> to vector<16x44xf32>
    %558 = vector.broadcast %555 : f32 to vector<16x44xf32>
    %559 = arith.mulf %558, %557 : vector<16x44xf32>
    %560 = arith.addf %554, %559 : vector<16x44xf32>
    %c78 = arith.constant 78 : index
    %561 = memref.load %arg2[%c78] : memref<98xf32, #tpu.memory_space<smem>>
    %c1_304 = arith.constant 1 : index
    %c4_305 = arith.constant 4 : index
    %c0_306 = arith.constant 0 : index
    %562 = vector.load %arg5[%c1_304, %c4_305, %c0_306] : memref<7x22x44xf32, #tpu.memory_space<vmem>>, vector<1x16x44xf32>
    %563 = vector.shape_cast %562 : vector<1x16x44xf32> to vector<16x44xf32>
    %564 = vector.broadcast %561 : f32 to vector<16x44xf32>
    %565 = arith.mulf %564, %563 : vector<16x44xf32>
    %566 = arith.addf %560, %565 : vector<16x44xf32>
    %c79 = arith.constant 79 : index
    %567 = memref.load %arg2[%c79] : memref<98xf32, #tpu.memory_space<smem>>
    %c2_307 = arith.constant 2 : index
    %c4_308 = arith.constant 4 : index
    %c0_309 = arith.constant 0 : index
    %568 = vector.load %arg5[%c2_307, %c4_308, %c0_309] : memref<7x22x44xf32, #tpu.memory_space<vmem>>, vector<1x16x44xf32>
    %569 = vector.shape_cast %568 : vector<1x16x44xf32> to vector<16x44xf32>
    %570 = vector.broadcast %567 : f32 to vector<16x44xf32>
    %571 = arith.mulf %570, %569 : vector<16x44xf32>
    %572 = arith.addf %566, %571 : vector<16x44xf32>
    %c80 = arith.constant 80 : index
    %573 = memref.load %arg2[%c80] : memref<98xf32, #tpu.memory_space<smem>>
    %c3_310 = arith.constant 3 : index
    %c4_311 = arith.constant 4 : index
    %c0_312 = arith.constant 0 : index
    %574 = vector.load %arg5[%c3_310, %c4_311, %c0_312] : memref<7x22x44xf32, #tpu.memory_space<vmem>>, vector<1x16x44xf32>
    %575 = vector.shape_cast %574 : vector<1x16x44xf32> to vector<16x44xf32>
    %576 = vector.broadcast %573 : f32 to vector<16x44xf32>
    %577 = arith.mulf %576, %575 : vector<16x44xf32>
    %578 = arith.addf %572, %577 : vector<16x44xf32>
    %c81 = arith.constant 81 : index
    %579 = memref.load %arg2[%c81] : memref<98xf32, #tpu.memory_space<smem>>
    %c4_313 = arith.constant 4 : index
    %c4_314 = arith.constant 4 : index
    %c0_315 = arith.constant 0 : index
    %580 = vector.load %arg5[%c4_313, %c4_314, %c0_315] : memref<7x22x44xf32, #tpu.memory_space<vmem>>, vector<1x16x44xf32>
    %581 = vector.shape_cast %580 : vector<1x16x44xf32> to vector<16x44xf32>
    %582 = vector.broadcast %579 : f32 to vector<16x44xf32>
    %583 = arith.mulf %582, %581 : vector<16x44xf32>
    %584 = arith.addf %578, %583 : vector<16x44xf32>
    %c82 = arith.constant 82 : index
    %585 = memref.load %arg2[%c82] : memref<98xf32, #tpu.memory_space<smem>>
    %c5_316 = arith.constant 5 : index
    %c4_317 = arith.constant 4 : index
    %c0_318 = arith.constant 0 : index
    %586 = vector.load %arg5[%c5_316, %c4_317, %c0_318] : memref<7x22x44xf32, #tpu.memory_space<vmem>>, vector<1x16x44xf32>
    %587 = vector.shape_cast %586 : vector<1x16x44xf32> to vector<16x44xf32>
    %588 = vector.broadcast %585 : f32 to vector<16x44xf32>
    %589 = arith.mulf %588, %587 : vector<16x44xf32>
    %590 = arith.addf %584, %589 : vector<16x44xf32>
    %c83 = arith.constant 83 : index
    %591 = memref.load %arg2[%c83] : memref<98xf32, #tpu.memory_space<smem>>
    %c6_319 = arith.constant 6 : index
    %c4_320 = arith.constant 4 : index
    %c0_321 = arith.constant 0 : index
    %592 = vector.load %arg5[%c6_319, %c4_320, %c0_321] : memref<7x22x44xf32, #tpu.memory_space<vmem>>, vector<1x16x44xf32>
    %593 = vector.shape_cast %592 : vector<1x16x44xf32> to vector<16x44xf32>
    %594 = vector.broadcast %591 : f32 to vector<16x44xf32>
    %595 = arith.mulf %594, %593 : vector<16x44xf32>
    %596 = arith.addf %590, %595 : vector<16x44xf32>
    %c84 = arith.constant 84 : index
    %597 = memref.load %arg2[%c84] : memref<98xf32, #tpu.memory_space<smem>>
    %c0_322 = arith.constant 0 : index
    %c5_323 = arith.constant 5 : index
    %c0_324 = arith.constant 0 : index
    %598 = vector.load %arg5[%c0_322, %c5_323, %c0_324] : memref<7x22x44xf32, #tpu.memory_space<vmem>>, vector<1x16x44xf32>
    %599 = vector.shape_cast %598 : vector<1x16x44xf32> to vector<16x44xf32>
    %600 = vector.broadcast %597 : f32 to vector<16x44xf32>
    %601 = arith.mulf %600, %599 : vector<16x44xf32>
    %602 = arith.addf %596, %601 : vector<16x44xf32>
    %c85 = arith.constant 85 : index
    %603 = memref.load %arg2[%c85] : memref<98xf32, #tpu.memory_space<smem>>
    %c1_325 = arith.constant 1 : index
    %c5_326 = arith.constant 5 : index
    %c0_327 = arith.constant 0 : index
    %604 = vector.load %arg5[%c1_325, %c5_326, %c0_327] : memref<7x22x44xf32, #tpu.memory_space<vmem>>, vector<1x16x44xf32>
    %605 = vector.shape_cast %604 : vector<1x16x44xf32> to vector<16x44xf32>
    %606 = vector.broadcast %603 : f32 to vector<16x44xf32>
    %607 = arith.mulf %606, %605 : vector<16x44xf32>
    %608 = arith.addf %602, %607 : vector<16x44xf32>
    %c86 = arith.constant 86 : index
    %609 = memref.load %arg2[%c86] : memref<98xf32, #tpu.memory_space<smem>>
    %c2_328 = arith.constant 2 : index
    %c5_329 = arith.constant 5 : index
    %c0_330 = arith.constant 0 : index
    %610 = vector.load %arg5[%c2_328, %c5_329, %c0_330] : memref<7x22x44xf32, #tpu.memory_space<vmem>>, vector<1x16x44xf32>
    %611 = vector.shape_cast %610 : vector<1x16x44xf32> to vector<16x44xf32>
    %612 = vector.broadcast %609 : f32 to vector<16x44xf32>
    %613 = arith.mulf %612, %611 : vector<16x44xf32>
    %614 = arith.addf %608, %613 : vector<16x44xf32>
    %c87 = arith.constant 87 : index
    %615 = memref.load %arg2[%c87] : memref<98xf32, #tpu.memory_space<smem>>
    %c3_331 = arith.constant 3 : index
    %c5_332 = arith.constant 5 : index
    %c0_333 = arith.constant 0 : index
    %616 = vector.load %arg5[%c3_331, %c5_332, %c0_333] : memref<7x22x44xf32, #tpu.memory_space<vmem>>, vector<1x16x44xf32>
    %617 = vector.shape_cast %616 : vector<1x16x44xf32> to vector<16x44xf32>
    %618 = vector.broadcast %615 : f32 to vector<16x44xf32>
    %619 = arith.mulf %618, %617 : vector<16x44xf32>
    %620 = arith.addf %614, %619 : vector<16x44xf32>
    %c88 = arith.constant 88 : index
    %621 = memref.load %arg2[%c88] : memref<98xf32, #tpu.memory_space<smem>>
    %c4_334 = arith.constant 4 : index
    %c5_335 = arith.constant 5 : index
    %c0_336 = arith.constant 0 : index
    %622 = vector.load %arg5[%c4_334, %c5_335, %c0_336] : memref<7x22x44xf32, #tpu.memory_space<vmem>>, vector<1x16x44xf32>
    %623 = vector.shape_cast %622 : vector<1x16x44xf32> to vector<16x44xf32>
    %624 = vector.broadcast %621 : f32 to vector<16x44xf32>
    %625 = arith.mulf %624, %623 : vector<16x44xf32>
    %626 = arith.addf %620, %625 : vector<16x44xf32>
    %c89 = arith.constant 89 : index
    %627 = memref.load %arg2[%c89] : memref<98xf32, #tpu.memory_space<smem>>
    %c5_337 = arith.constant 5 : index
    %c5_338 = arith.constant 5 : index
    %c0_339 = arith.constant 0 : index
    %628 = vector.load %arg5[%c5_337, %c5_338, %c0_339] : memref<7x22x44xf32, #tpu.memory_space<vmem>>, vector<1x16x44xf32>
    %629 = vector.shape_cast %628 : vector<1x16x44xf32> to vector<16x44xf32>
    %630 = vector.broadcast %627 : f32 to vector<16x44xf32>
    %631 = arith.mulf %630, %629 : vector<16x44xf32>
    %632 = arith.addf %626, %631 : vector<16x44xf32>
    %c90 = arith.constant 90 : index
    %633 = memref.load %arg2[%c90] : memref<98xf32, #tpu.memory_space<smem>>
    %c6_340 = arith.constant 6 : index
    %c5_341 = arith.constant 5 : index
    %c0_342 = arith.constant 0 : index
    %634 = vector.load %arg5[%c6_340, %c5_341, %c0_342] : memref<7x22x44xf32, #tpu.memory_space<vmem>>, vector<1x16x44xf32>
    %635 = vector.shape_cast %634 : vector<1x16x44xf32> to vector<16x44xf32>
    %636 = vector.broadcast %633 : f32 to vector<16x44xf32>
    %637 = arith.mulf %636, %635 : vector<16x44xf32>
    %638 = arith.addf %632, %637 : vector<16x44xf32>
    %c91 = arith.constant 91 : index
    %639 = memref.load %arg2[%c91] : memref<98xf32, #tpu.memory_space<smem>>
    %c0_343 = arith.constant 0 : index
    %c6_344 = arith.constant 6 : index
    %c0_345 = arith.constant 0 : index
    %640 = vector.load %arg5[%c0_343, %c6_344, %c0_345] : memref<7x22x44xf32, #tpu.memory_space<vmem>>, vector<1x16x44xf32>
    %641 = vector.shape_cast %640 : vector<1x16x44xf32> to vector<16x44xf32>
    %642 = vector.broadcast %639 : f32 to vector<16x44xf32>
    %643 = arith.mulf %642, %641 : vector<16x44xf32>
    %644 = arith.addf %638, %643 : vector<16x44xf32>
    %c92 = arith.constant 92 : index
    %645 = memref.load %arg2[%c92] : memref<98xf32, #tpu.memory_space<smem>>
    %c1_346 = arith.constant 1 : index
    %c6_347 = arith.constant 6 : index
    %c0_348 = arith.constant 0 : index
    %646 = vector.load %arg5[%c1_346, %c6_347, %c0_348] : memref<7x22x44xf32, #tpu.memory_space<vmem>>, vector<1x16x44xf32>
    %647 = vector.shape_cast %646 : vector<1x16x44xf32> to vector<16x44xf32>
    %648 = vector.broadcast %645 : f32 to vector<16x44xf32>
    %649 = arith.mulf %648, %647 : vector<16x44xf32>
    %650 = arith.addf %644, %649 : vector<16x44xf32>
    %c93 = arith.constant 93 : index
    %651 = memref.load %arg2[%c93] : memref<98xf32, #tpu.memory_space<smem>>
    %c2_349 = arith.constant 2 : index
    %c6_350 = arith.constant 6 : index
    %c0_351 = arith.constant 0 : index
    %652 = vector.load %arg5[%c2_349, %c6_350, %c0_351] : memref<7x22x44xf32, #tpu.memory_space<vmem>>, vector<1x16x44xf32>
    %653 = vector.shape_cast %652 : vector<1x16x44xf32> to vector<16x44xf32>
    %654 = vector.broadcast %651 : f32 to vector<16x44xf32>
    %655 = arith.mulf %654, %653 : vector<16x44xf32>
    %656 = arith.addf %650, %655 : vector<16x44xf32>
    %c94 = arith.constant 94 : index
    %657 = memref.load %arg2[%c94] : memref<98xf32, #tpu.memory_space<smem>>
    %c3_352 = arith.constant 3 : index
    %c6_353 = arith.constant 6 : index
    %c0_354 = arith.constant 0 : index
    %658 = vector.load %arg5[%c3_352, %c6_353, %c0_354] : memref<7x22x44xf32, #tpu.memory_space<vmem>>, vector<1x16x44xf32>
    %659 = vector.shape_cast %658 : vector<1x16x44xf32> to vector<16x44xf32>
    %660 = vector.broadcast %657 : f32 to vector<16x44xf32>
    %661 = arith.mulf %660, %659 : vector<16x44xf32>
    %662 = arith.addf %656, %661 : vector<16x44xf32>
    %c95 = arith.constant 95 : index
    %663 = memref.load %arg2[%c95] : memref<98xf32, #tpu.memory_space<smem>>
    %c4_355 = arith.constant 4 : index
    %c6_356 = arith.constant 6 : index
    %c0_357 = arith.constant 0 : index
    %664 = vector.load %arg5[%c4_355, %c6_356, %c0_357] : memref<7x22x44xf32, #tpu.memory_space<vmem>>, vector<1x16x44xf32>
    %665 = vector.shape_cast %664 : vector<1x16x44xf32> to vector<16x44xf32>
    %666 = vector.broadcast %663 : f32 to vector<16x44xf32>
    %667 = arith.mulf %666, %665 : vector<16x44xf32>
    %668 = arith.addf %662, %667 : vector<16x44xf32>
    %c96 = arith.constant 96 : index
    %669 = memref.load %arg2[%c96] : memref<98xf32, #tpu.memory_space<smem>>
    %c5_358 = arith.constant 5 : index
    %c6_359 = arith.constant 6 : index
    %c0_360 = arith.constant 0 : index
    %670 = vector.load %arg5[%c5_358, %c6_359, %c0_360] : memref<7x22x44xf32, #tpu.memory_space<vmem>>, vector<1x16x44xf32>
    %671 = vector.shape_cast %670 : vector<1x16x44xf32> to vector<16x44xf32>
    %672 = vector.broadcast %669 : f32 to vector<16x44xf32>
    %673 = arith.mulf %672, %671 : vector<16x44xf32>
    %674 = arith.addf %668, %673 : vector<16x44xf32>
    %c97 = arith.constant 97 : index
    %675 = memref.load %arg2[%c97] : memref<98xf32, #tpu.memory_space<smem>>
    %c6_361 = arith.constant 6 : index
    %c6_362 = arith.constant 6 : index
    %c0_363 = arith.constant 0 : index
    %676 = vector.load %arg5[%c6_361, %c6_362, %c0_363] : memref<7x22x44xf32, #tpu.memory_space<vmem>>, vector<1x16x44xf32>
    %677 = vector.shape_cast %676 : vector<1x16x44xf32> to vector<16x44xf32>
    %678 = vector.broadcast %675 : f32 to vector<16x44xf32>
    %679 = arith.mulf %678, %677 : vector<16x44xf32>
    %680 = arith.addf %674, %679 : vector<16x44xf32>
    %cst_364 = arith.constant 5.000000e-01 : f32
    %681 = vector.broadcast %cst_364 : f32 to vector<16x44xf32>
    %682 = arith.mulf %681, %680 : vector<16x44xf32>
    %683 = math.tanh %682 : vector<16x44xf32>
    %cst_365 = arith.constant 1.000000e+00 : f32
    %684 = vector.broadcast %cst_365 : f32 to vector<16x44xf32>
    %685 = arith.addf %683, %684 : vector<16x44xf32>
    %cst_366 = arith.constant 5.000000e-01 : f32
    %686 = vector.broadcast %cst_366 : f32 to vector<16x44xf32>
    %687 = arith.mulf %686, %685 : vector<16x44xf32>
    %688 = vector.extract_strided_slice %687 {offsets = [0, 3], sizes = [16, 16], strides = [1, 1]} : vector<16x44xf32> to vector<16x16xf32>
    %689 = vector.extract_strided_slice %687 {offsets = [0, 25], sizes = [16, 16], strides = [1, 1]} : vector<16x44xf32> to vector<16x16xf32>
    %690 = tpu.concatenate %688, %689 in 1 : vector<16x16xf32>, vector<16x16xf32> -> vector<16x32xf32>
    %c0_367 = arith.constant 0 : index
    %c0_368 = arith.constant 0 : index
    %c0_369 = arith.constant 0 : index
    %691 = vector.load %arg3[%c0_367, %c0_368, %c0_369] : memref<1x16x32xf32, #tpu.memory_space<vmem>>, vector<1x16x32xf32>
    %692 = vector.shape_cast %691 : vector<1x16x32xf32> to vector<16x32xf32>
    %693 = vector.shape_cast %690 : vector<16x32xf32> to vector<1x16x32xf32>
    tpu.vector_store %arg3[%c0_367, %c0_368, %c0_369], %693 {strides = array<i32>} : memref<1x16x32xf32, #tpu.memory_space<vmem>>, vector<1x16x32xf32>,
    return
  }
  func.func @transform_0(%arg0: i32) -> (i32, i32, i32, i32) {
    %c0_i32 = arith.constant 0 : i32
    %c0_i32_0 = arith.constant 0 : i32
    %c0_i32_1 = arith.constant 0 : i32
    %c0_i32_2 = arith.constant 0 : i32
    return %arg0, %c0_i32, %c0_i32_0, %c0_i32_1 : i32, i32, i32, i32
  }
  func.func @transform_1(%arg0: i32) -> i32 {
    %c0_i32 = arith.constant 0 : i32
    %c0_i32_0 = arith.constant 0 : i32
    return %c0_i32 : i32
  }
  func.func @transform_2(%arg0: i32) -> (i32, i32, i32) {
    %c0_i32 = arith.constant 0 : i32
    %c0_i32_0 = arith.constant 0 : i32
    %c0_i32_1 = arith.constant 0 : i32
    return %arg0, %c0_i32, %c0_i32_0 : i32, i32, i32
  }
}

</mosaic_0001>

<llo_original>
// kernel: spatial_attention.1
$region0: #{spatial_attention.1}
  #allocation0 [shape = 'u32[]', space=smem, size = 0x4, offset = 0x4, fixed_abs, tag = 'smem constant byte address 0x4 - core index']
  #allocation1 [shape = 'u32[144,128]{1,0:T(1,128)}', space=vmem, size = 0x12000, scoped, tag = 'internal scratch']
  #allocation2 [shape = 'f32[7,22,44]{2,1,0:T(8,128)}', space=vmem, size = 0x15000, scoped, tag = 'scratch operand']
  #allocation3 [shape = 'f32[7,22,44]{2,1,0:T(8,128)}', space=vmem, size = 0x15000, scoped, tag = 'scratch operand']
  %s0 = inlined_call_operand.vmem [shape: f32[1,4,22,44], index: 0, kind: input, shape index: {}]
  %s1 = inlined_call_operand.vmem [shape: f32[98], index: 1, kind: input, shape index: {}]
  %s2 = inlined_call_operand.vmem [shape: f32[1,16,32], index: 2, kind: output, shape index: {}]
  %s3 = sld [smem:[#allocation0]]
  $region22: #{spatial_attention.1} parent=0
    _
  %s5 = ssub.s32 1, %s3
  %s6 = scalar_select 0, %s5, %s3
  $region1: #{spatial_attention.1} parent=0
    #allocation4 [shape = 'u8[512]{0}', space=smem, size = 0x200, scoped, tag = 'input window, operand 1, single buffered']
    #allocation5 [shape = 's32[1]{0}', space=sflag, size = 0x4, scoped, tag = 'scoped memory for spatial_attention.1']
    %7 = vsyncpa [#allocation5], 0
    // Predicated region
    $region2: #{spatial_attention.1} parent=1 // pred_check
      _
    $region3: #{spatial_attention.1} parent=1 // pred_check_branch
      %9 = sbr.rel (0) target = $region5
    $region4: #{spatial_attention.1} parent=1 // pred_region
      _
    $region5: #{spatial_attention.1} parent=1 // pred_fallthru
      _
    // Predicated region
    $region6: #{spatial_attention.1} parent=1 // pred_check
      _
    $region7: #{spatial_attention.1} parent=1 // pred_check_branch
      %11 = sbr.rel (0) target = $region9
    $region8: #{spatial_attention.1} parent=1 // pred_region
      %s13 = ssub.s32 16, 16
      %14 = vsyncadd [#allocation5], %s13
      %s16 = sshll.u32 %s1, 4
      %s17 = int_to_ptr.vmem [resolvable:$true] %s16
      %19 = dma.vmem_to_smem %s17, 16, [#allocation4], [#allocation5]
    $region9: #{spatial_attention.1} parent=1 // pred_fallthru
      _
    // Predicated region
    $region10: #{spatial_attention.1} parent=1 // pred_check
      _
    $region11: #{spatial_attention.1} parent=1 // pred_check_branch
      %21 = sbr.rel (0) target = $region13
    $region12: #{spatial_attention.1} parent=1 // pred_region
      %22 = dma.done [#allocation5], 16
    $region13: #{spatial_attention.1} parent=1 // pred_fallthru
      _
    %23 = sfence
    %v24 = vld [vmem:[%s0] sm:$0xff]
    %v25 = vld [vmem:[%s0 + $0x8] sm:$0xff]
    %v26 = vld [vmem:[%s0 + $0x10] sm:$0x3f]
    %s27 = scalar_lea.vmem %s0, 24
    %v28 = vld [vmem:[%s27] sm:$0xff]
    %v29 = vld [vmem:[%s27 + $0x8] sm:$0xff]
    %v30 = vld [vmem:[%s27 + $0x10] sm:$0x3f]
    %v31 = vadd.f32 %v24, %v28
    %v32 = vadd.f32 %v25, %v29
    %v33 = vadd.f32 %v26, %v30
    %v34 = vmax.f32 %v24, %v28
    %v35 = vmax.f32 %v25, %v29
    %v36 = vmax.f32 %v26, %v30
    %s37 = scalar_lea.vmem %s0, 48
    %v38 = vld [vmem:[%s37] sm:$0xff]
    %v39 = vld [vmem:[%s37 + $0x8] sm:$0xff]
    %v40 = vld [vmem:[%s37 + $0x10] sm:$0x3f]
    %v41 = vadd.f32 %v31, %v38
    %v42 = vadd.f32 %v32, %v39
    %v43 = vadd.f32 %v33, %v40
    %v44 = vmax.f32 %v34, %v38
    %v45 = vmax.f32 %v35, %v39
    %v46 = vmax.f32 %v36, %v40
    %s47 = scalar_lea.vmem %s0, 72
    %v48 = vld [vmem:[%s47] sm:$0xff]
    %v49 = vld [vmem:[%s47 + $0x8] sm:$0xff]
    %v50 = vld [vmem:[%s47 + $0x10] sm:$0x3f]
    %v51 = vadd.f32 %v41, %v48
    %v52 = vadd.f32 %v42, %v49
    %v53 = vadd.f32 %v43, %v50
    %v54 = vmax.f32 %v44, %v48
    %v55 = vmax.f32 %v45, %v49
    %v56 = vmax.f32 %v46, %v50
    %60 = vrot.lane.b32.xlu0 %v51, 3
    %v61 = vpop.permute.xlu0 %60
    %62 = vrot.lane.b32.xlu0 %v52, 3
    %v63 = vpop.permute.xlu0 %62
    %64 = vrot.lane.b32.xlu0 %v53, 3
    %v65 = vpop.permute.xlu0 %64
    %vm69 = vcmask 23552
    %v70 = vsel %vm69, 0.0, %v61
    %v71 = vsel %vm69, 0.0, %v63
    %v72 = vsel %vm69, 0.0, %v65
    %vm73 = vcmask 359424
    %74 = vst.msk [vmem:[#allocation2] sm:$0xff] %vm73, %v70
    %75 = vst.msk [vmem:[#allocation2 + $0x8] sm:$0xff] %vm73, %v71
    %vm76 = vcmask 357376
    %77 = vst.msk [vmem:[#allocation2 + $0x10] sm:$0x3f] %vm76, %v72
    %81 = vrot.lane.b32.xlu0 %v54, 3
    %v82 = vpop.permute.xlu0 %81
    %83 = vrot.lane.b32.xlu0 %v55, 3
    %v84 = vpop.permute.xlu0 %83
    %85 = vrot.lane.b32.xlu0 %v56, 3
    %v86 = vpop.permute.xlu0 %85
    %v90 = vsel %vm69, 0.0, %v82
    %v91 = vsel %vm69, 0.0, %v84
    %v92 = vsel %vm69, 0.0, %v86
    %93 = vst.msk [vmem:[#allocation3] sm:$0xff] %vm73, %v90
    %94 = vst.msk [vmem:[#allocation3 + $0x8] sm:$0xff] %vm73, %v91
    %95 = vst.msk [vmem:[#allocation3 + $0x10] sm:$0x3f] %vm76, %v92
    %96 = vrot.lane.b32.xlu0 %v51, 2
    %v97 = vpop.permute.xlu0 %96
    %98 = vrot.lane.b32.xlu0 %v52, 2
    %v99 = vpop.permute.xlu0 %98
    %100 = vrot.lane.b32.xlu0 %v53, 2
    %v101 = vpop.permute.xlu0 %100
    %vm105 = vcmask 15360
    %v106 = vsel %vm105, 0.0, %v97
    %v107 = vsel %vm105, 0.0, %v99
    %v108 = vsel %vm105, 0.0, %v101
    %s109 = scalar_lea.vmem [#allocation2], 24
    %110 = vst.msk [vmem:[%s109] sm:$0xff] %vm73, %v106
    %111 = vst.msk [vmem:[%s109 + $0x8] sm:$0xff] %vm73, %v107
    %112 = vst.msk [vmem:[%s109 + $0x10] sm:$0x3f] %vm76, %v108
    %113 = vrot.lane.b32.xlu0 %v54, 2
    %v114 = vpop.permute.xlu0 %113
    %115 = vrot.lane.b32.xlu0 %v55, 2
    %v116 = vpop.permute.xlu0 %115
    %117 = vrot.lane.b32.xlu0 %v56, 2
    %v118 = vpop.permute.xlu0 %117
    %v122 = vsel %vm105, 0.0, %v114
    %v123 = vsel %vm105, 0.0, %v116
    %v124 = vsel %vm105, 0.0, %v118
    %s125 = scalar_lea.vmem [#allocation3], 24
    %126 = vst.msk [vmem:[%s125] sm:$0xff] %vm73, %v122
    %127 = vst.msk [vmem:[%s125 + $0x8] sm:$0xff] %vm73, %v123
    %128 = vst.msk [vmem:[%s125 + $0x10] sm:$0x3f] %vm76, %v124
    %129 = vrot.lane.b32.xlu0 %v51, 1
    %v130 = vpop.permute.xlu0 %129
    %131 = vrot.lane.b32.xlu0 %v52, 1
    %v132 = vpop.permute.xlu0 %131
    %133 = vrot.lane.b32.xlu0 %v53, 1
    %v134 = vpop.permute.xlu0 %133
    %vm138 = vcmask 7168
    %v139 = vsel %vm138, 0.0, %v130
    %v140 = vsel %vm138, 0.0, %v132
    %v141 = vsel %vm138, 0.0, %v134
    %s142 = scalar_lea.vmem [#allocation2], 48
    %143 = vst.msk [vmem:[%s142] sm:$0xff] %vm73, %v139
    %144 = vst.msk [vmem:[%s142 + $0x8] sm:$0xff] %vm73, %v140
    %145 = vst.msk [vmem:[%s142 + $0x10] sm:$0x3f] %vm76, %v141
    %146 = vrot.lane.b32.xlu0 %v54, 1
    %v147 = vpop.permute.xlu0 %146
    %148 = vrot.lane.b32.xlu0 %v55, 1
    %v149 = vpop.permute.xlu0 %148
    %150 = vrot.lane.b32.xlu0 %v56, 1
    %v151 = vpop.permute.xlu0 %150
    %v155 = vsel %vm138, 0.0, %v147
    %v156 = vsel %vm138, 0.0, %v149
    %v157 = vsel %vm138, 0.0, %v151
    %s158 = scalar_lea.vmem [#allocation3], 48
    %159 = vst.msk [vmem:[%s158] sm:$0xff] %vm73, %v155
    %160 = vst.msk [vmem:[%s158 + $0x8] sm:$0xff] %vm73, %v156
    %161 = vst.msk [vmem:[%s158 + $0x10] sm:$0x3f] %vm76, %v157
    %s162 = scalar_lea.vmem [#allocation2], 72
    %163 = vst.msk [vmem:[%s162] sm:$0xff] %vm73, %v51
    %164 = vst.msk [vmem:[%s162 + $0x8] sm:$0xff] %vm73, %v52
    %165 = vst.msk [vmem:[%s162 + $0x10] sm:$0x3f] %vm76, %v53
    %s166 = scalar_lea.vmem [#allocation3], 72
    %167 = vst.msk [vmem:[%s166] sm:$0xff] %vm73, %v54
    %168 = vst.msk [vmem:[%s166 + $0x8] sm:$0xff] %vm73, %v55
    %169 = vst.msk [vmem:[%s166 + $0x10] sm:$0x3f] %vm76, %v56
    %170 = vrot.lane.b32.xlu0 %v51, 127
    %v171 = vpop.permute.xlu0 %170
    %172 = vrot.lane.b32.xlu0 %v52, 127
    %v173 = vpop.permute.xlu0 %172
    %174 = vrot.lane.b32.xlu0 %v53, 127
    %v175 = vpop.permute.xlu0 %174
    %vm179 = vcmask 351232
    %v180 = vsel %vm179, %v171, 0.0
    %v181 = vsel %vm179, %v173, 0.0
    %v182 = vsel %vm179, %v175, 0.0
    %s183 = scalar_lea.vmem [#allocation2], 96
    %184 = vst.msk [vmem:[%s183] sm:$0xff] %vm73, %v180
    %185 = vst.msk [vmem:[%s183 + $0x8] sm:$0xff] %vm73, %v181
    %186 = vst.msk [vmem:[%s183 + $0x10] sm:$0x3f] %vm76, %v182
    %187 = vrot.lane.b32.xlu0 %v54, 127
    %v188 = vpop.permute.xlu0 %187
    %189 = vrot.lane.b32.xlu0 %v55, 127
    %v190 = vpop.permute.xlu0 %189
    %191 = vrot.lane.b32.xlu0 %v56, 127
    %v192 = vpop.permute.xlu0 %191
    %v196 = vsel %vm179, %v188, 0.0
    %v197 = vsel %vm179, %v190, 0.0
    %v198 = vsel %vm179, %v192, 0.0
    %s199 = scalar_lea.vmem [#allocation3], 96
    %200 = vst.msk [vmem:[%s199] sm:$0xff] %vm73, %v196
    %201 = vst.msk [vmem:[%s199 + $0x8] sm:$0xff] %vm73, %v197
    %202 = vst.msk [vmem:[%s199 + $0x10] sm:$0x3f] %vm76, %v198
    %203 = vrot.lane.b32.xlu0 %v51, 126
    %v204 = vpop.permute.xlu0 %203
    %205 = vrot.lane.b32.xlu0 %v52, 126
    %v206 = vpop.permute.xlu0 %205
    %207 = vrot.lane.b32.xlu0 %v53, 126
    %v208 = vpop.permute.xlu0 %207
    %vm212 = vcmask 343040
    %v213 = vsel %vm212, %v204, 0.0
    %v214 = vsel %vm212, %v206, 0.0
    %v215 = vsel %vm212, %v208, 0.0
    %s216 = scalar_lea.vmem [#allocation2], 120
    %217 = vst.msk [vmem:[%s216] sm:$0xff] %vm73, %v213
    %218 = vst.msk [vmem:[%s216 + $0x8] sm:$0xff] %vm73, %v214
    %219 = vst.msk [vmem:[%s216 + $0x10] sm:$0x3f] %vm76, %v215
    %220 = vrot.lane.b32.xlu0 %v54, 126
    %v221 = vpop.permute.xlu0 %220
    %222 = vrot.lane.b32.xlu0 %v55, 126
    %v223 = vpop.permute.xlu0 %222
    %224 = vrot.lane.b32.xlu0 %v56, 126
    %v225 = vpop.permute.xlu0 %224
    %v229 = vsel %vm212, %v221, 0.0
    %v230 = vsel %vm212, %v223, 0.0
    %v231 = vsel %vm212, %v225, 0.0
    %s232 = scalar_lea.vmem [#allocation3], 120
    %233 = vst.msk [vmem:[%s232] sm:$0xff] %vm73, %v229
    %234 = vst.msk [vmem:[%s232 + $0x8] sm:$0xff] %vm73, %v230
    %235 = vst.msk [vmem:[%s232 + $0x10] sm:$0x3f] %vm76, %v231
    %236 = vrot.lane.b32.xlu0 %v51, 125
    %v237 = vpop.permute.xlu0 %236
    %238 = vrot.lane.b32.xlu0 %v52, 125
    %v239 = vpop.permute.xlu0 %238
    %240 = vrot.lane.b32.xlu0 %v53, 125
    %v241 = vpop.permute.xlu0 %240
    %vm245 = vcmask 334848
    %v246 = vsel %vm245, %v237, 0.0
    %v247 = vsel %vm245, %v239, 0.0
    %v248 = vsel %vm245, %v241, 0.0
    %s249 = scalar_lea.vmem [#allocation2], 144
    %250 = vst.msk [vmem:[%s249] sm:$0xff] %vm73, %v246
    %251 = vst.msk [vmem:[%s249 + $0x8] sm:$0xff] %vm73, %v247
    %252 = vst.msk [vmem:[%s249 + $0x10] sm:$0x3f] %vm76, %v248
    %253 = vrot.lane.b32.xlu0 %v54, 125
    %v254 = vpop.permute.xlu0 %253
    %255 = vrot.lane.b32.xlu0 %v55, 125
    %v256 = vpop.permute.xlu0 %255
    %257 = vrot.lane.b32.xlu0 %v56, 125
    %v258 = vpop.permute.xlu0 %257
    %v262 = vsel %vm245, %v254, 0.0
    %v263 = vsel %vm245, %v256, 0.0
    %v264 = vsel %vm245, %v258, 0.0
    %s265 = scalar_lea.vmem [#allocation3], 144
    %266 = vst.msk [vmem:[%s265] sm:$0xff] %vm73, %v262
    %267 = vst.msk [vmem:[%s265 + $0x8] sm:$0xff] %vm73, %v263
    %268 = vst.msk [vmem:[%s265 + $0x10] sm:$0x3f] %vm76, %v264
    %s269 = sld [smem:[#allocation4]]
    %v270 = vld [vmem:[#allocation2] sm:$0xff]
    %v271 = vld [vmem:[#allocation2 + $0x8] sm:$0xff]
    %v272 = vstv %s269
    %v273 = vmul.f32 %v272, %v270
    %v274 = vmul.f32 %v272, %v271
    %v275 = vadd.f32 %v273, 0.0
    %v276 = vadd.f32 %v274, 0.0
    %s277 = sld [smem:[#allocation4 + $0x1]]
    %v278 = vld [vmem:[%s109] sm:$0xff]
    %v279 = vld [vmem:[%s109 + $0x8] sm:$0xff]
    %v280 = vstv %s277
    %v281 = vmul.f32 %v280, %v278
    %v282 = vmul.f32 %v280, %v279
    %v283 = vadd.f32 %v275, %v281
    %v284 = vadd.f32 %v276, %v282
    %s285 = sld [smem:[#allocation4 + $0x2]]
    %v286 = vld [vmem:[%s142] sm:$0xff]
    %v287 = vld [vmem:[%s142 + $0x8] sm:$0xff]
    %v288 = vstv %s285
    %v289 = vmul.f32 %v288, %v286
    %v290 = vmul.f32 %v288, %v287
    %v291 = vadd.f32 %v283, %v289
    %v292 = vadd.f32 %v284, %v290
    %s293 = sld [smem:[#allocation4 + $0x3]]
    %v294 = vld [vmem:[%s162] sm:$0xff]
    %v295 = vld [vmem:[%s162 + $0x8] sm:$0xff]
    %v296 = vstv %s293
    %v297 = vmul.f32 %v296, %v294
    %v298 = vmul.f32 %v296, %v295
    %v299 = vadd.f32 %v291, %v297
    %v300 = vadd.f32 %v292, %v298
    %s301 = sld [smem:[#allocation4 + $0x4]]
    %v302 = vld [vmem:[%s183] sm:$0xff]
    %v303 = vld [vmem:[%s183 + $0x8] sm:$0xff]
    %v304 = vstv %s301
    %v305 = vmul.f32 %v304, %v302
    %v306 = vmul.f32 %v304, %v303
    %v307 = vadd.f32 %v299, %v305
    %v308 = vadd.f32 %v300, %v306
    %s309 = sld [smem:[#allocation4 + $0x5]]
    %v310 = vld [vmem:[%s216] sm:$0xff]
    %v311 = vld [vmem:[%s216 + $0x8] sm:$0xff]
    %v312 = vstv %s309
    %v313 = vmul.f32 %v312, %v310
    %v314 = vmul.f32 %v312, %v311
    %v315 = vadd.f32 %v307, %v313
    %v316 = vadd.f32 %v308, %v314
    %s317 = sld [smem:[#allocation4 + $0x6]]
    %v318 = vld [vmem:[%s249] sm:$0xff]
    %v319 = vld [vmem:[%s249 + $0x8] sm:$0xff]
    %v320 = vstv %s317
    %v321 = vmul.f32 %v320, %v318
    %v322 = vmul.f32 %v320, %v319
    %v323 = vadd.f32 %v315, %v321
    %v324 = vadd.f32 %v316, %v322
    %s325 = sld [smem:[#allocation4 + $0x7]]
    %v326 = vld [vmem:[#allocation2 + $0x1] sm:$0xff]
    %v327 = vld [vmem:[#allocation2 + $0x9] sm:$0xff]
    %v328 = vstv %s325
    %v329 = vmul.f32 %v328, %v326
    %v330 = vmul.f32 %v328, %v327
    %v331 = vadd.f32 %v323, %v329
    %v332 = vadd.f32 %v324, %v330
    %s333 = sld [smem:[#allocation4 + $0x8]]
    %v334 = vld [vmem:[%s109 + $0x1] sm:$0xff]
    %v335 = vld [vmem:[%s109 + $0x9] sm:$0xff]
    %v336 = vstv %s333
    %v337 = vmul.f32 %v336, %v334
    %v338 = vmul.f32 %v336, %v335
    %v339 = vadd.f32 %v331, %v337
    %v340 = vadd.f32 %v332, %v338
    %s341 = sld [smem:[#allocation4 + $0x9]]
    %v342 = vld [vmem:[%s142 + $0x1] sm:$0xff]
    %v343 = vld [vmem:[%s142 + $0x9] sm:$0xff]
    %v344 = vstv %s341
    %v345 = vmul.f32 %v344, %v342
    %v346 = vmul.f32 %v344, %v343
    %v347 = vadd.f32 %v339, %v345
    %v348 = vadd.f32 %v340, %v346
    %s349 = sld [smem:[#allocation4 + $0xa]]
    %v350 = vld [vmem:[%s162 + $0x1] sm:$0xff]
    %v351 = vld [vmem:[%s162 + $0x9] sm:$0xff]
    %v352 = vstv %s349
    %v353 = vmul.f32 %v352, %v350
    %v354 = vmul.f32 %v352, %v351
    %v355 = vadd.f32 %v347, %v353
    %v356 = vadd.f32 %v348, %v354
    %s357 = sld [smem:[#allocation4 + $0xb]]
    %v358 = vld [vmem:[%s183 + $0x1] sm:$0xff]
    %v359 = vld [vmem:[%s183 + $0x9] sm:$0xff]
    %v360 = vstv %s357
    %v361 = vmul.f32 %v360, %v358
    %v362 = vmul.f32 %v360, %v359
    %v363 = vadd.f32 %v355, %v361
    %v364 = vadd.f32 %v356, %v362
    %s365 = sld [smem:[#allocation4 + $0xc]]
    %v366 = vld [vmem:[%s216 + $0x1] sm:$0xff]
    %v367 = vld [vmem:[%s216 + $0x9] sm:$0xff]
    %v368 = vstv %s365
    %v369 = vmul.f32 %v368, %v366
    %v370 = vmul.f32 %v368, %v367
    %v371 = vadd.f32 %v363, %v369
    %v372 = vadd.f32 %v364, %v370
    %s373 = sld [smem:[#allocation4 + $0xd]]
    %v374 = vld [vmem:[%s249 + $0x1] sm:$0xff]
    %v375 = vld [vmem:[%s249 + $0x9] sm:$0xff]
    %v376 = vstv %s373
    %v377 = vmul.f32 %v376, %v374
    %v378 = vmul.f32 %v376, %v375
    %v379 = vadd.f32 %v371, %v377
    %v380 = vadd.f32 %v372, %v378
    %s381 = sld [smem:[#allocation4 + $0xe]]
    %v382 = vld [vmem:[#allocation2 + $0x2] sm:$0xff]
    %v383 = vld [vmem:[#allocation2 + $0xa] sm:$0xff]
    %v384 = vstv %s381
    %v385 = vmul.f32 %v384, %v382
    %v386 = vmul.f32 %v384, %v383
    %v387 = vadd.f32 %v379, %v385
    %v388 = vadd.f32 %v380, %v386
    %s389 = sld [smem:[#allocation4 + $0xf]]
    %v390 = vld [vmem:[%s109 + $0x2] sm:$0xff]
    %v391 = vld [vmem:[%s109 + $0xa] sm:$0xff]
    %v392 = vstv %s389
    %v393 = vmul.f32 %v392, %v390
    %v394 = vmul.f32 %v392, %v391
    %v395 = vadd.f32 %v387, %v393
    %v396 = vadd.f32 %v388, %v394
    %s397 = sld [smem:[#allocation4 + $0x10]]
    %v398 = vld [vmem:[%s142 + $0x2] sm:$0xff]
    %v399 = vld [vmem:[%s142 + $0xa] sm:$0xff]
    %v400 = vstv %s397
    %v401 = vmul.f32 %v400, %v398
    %v402 = vmul.f32 %v400, %v399
    %v403 = vadd.f32 %v395, %v401
    %v404 = vadd.f32 %v396, %v402
    %s405 = sld [smem:[#allocation4 + $0x11]]
    %v406 = vld [vmem:[%s162 + $0x2] sm:$0xff]
    %v407 = vld [vmem:[%s162 + $0xa] sm:$0xff]
    %v408 = vstv %s405
    %v409 = vmul.f32 %v408, %v406
    %v410 = vmul.f32 %v408, %v407
    %v411 = vadd.f32 %v403, %v409
    %v412 = vadd.f32 %v404, %v410
    %s413 = sld [smem:[#allocation4 + $0x12]]
    %v414 = vld [vmem:[%s183 + $0x2] sm:$0xff]
    %v415 = vld [vmem:[%s183 + $0xa] sm:$0xff]
    %v416 = vstv %s413
    %v417 = vmul.f32 %v416, %v414
    %v418 = vmul.f32 %v416, %v415
    %v419 = vadd.f32 %v411, %v417
    %v420 = vadd.f32 %v412, %v418
    %s421 = sld [smem:[#allocation4 + $0x13]]
    %v422 = vld [vmem:[%s216 + $0x2] sm:$0xff]
    %v423 = vld [vmem:[%s216 + $0xa] sm:$0xff]
    %v424 = vstv %s421
    %v425 = vmul.f32 %v424, %v422
    %v426 = vmul.f32 %v424, %v423
    %v427 = vadd.f32 %v419, %v425
    %v428 = vadd.f32 %v420, %v426
    %s429 = sld [smem:[#allocation4 + $0x14]]
    %v430 = vld [vmem:[%s249 + $0x2] sm:$0xff]
    %v431 = vld [vmem:[%s249 + $0xa] sm:$0xff]
    %v432 = vstv %s429
    %v433 = vmul.f32 %v432, %v430
    %v434 = vmul.f32 %v432, %v431
    %v435 = vadd.f32 %v427, %v433
    %v436 = vadd.f32 %v428, %v434
    %s437 = sld [smem:[#allocation4 + $0x15]]
    %v438 = vld [vmem:[#allocation2 + $0x3] sm:$0xff]
    %v439 = vld [vmem:[#allocation2 + $0xb] sm:$0xff]
    %v440 = vstv %s437
    %v441 = vmul.f32 %v440, %v438
    %v442 = vmul.f32 %v440, %v439
    %v443 = vadd.f32 %v435, %v441
    %v444 = vadd.f32 %v436, %v442
    %s445 = sld [smem:[#allocation4 + $0x16]]
    %v446 = vld [vmem:[%s109 + $0x3] sm:$0xff]
    %v447 = vld [vmem:[%s109 + $0xb] sm:$0xff]
    %v448 = vstv %s445
    %v449 = vmul.f32 %v448, %v446
    %v450 = vmul.f32 %v448, %v447
    %v451 = vadd.f32 %v443, %v449
    %v452 = vadd.f32 %v444, %v450
    %s453 = sld [smem:[#allocation4 + $0x17]]
    %v454 = vld [vmem:[%s142 + $0x3] sm:$0xff]
    %v455 = vld [vmem:[%s142 + $0xb] sm:$0xff]
    %v456 = vstv %s453
    %v457 = vmul.f32 %v456, %v454
    %v458 = vmul.f32 %v456, %v455
    %v459 = vadd.f32 %v451, %v457
    %v460 = vadd.f32 %v452, %v458
    %s461 = sld [smem:[#allocation4 + $0x18]]
    %v462 = vld [vmem:[%s162 + $0x3] sm:$0xff]
    %v463 = vld [vmem:[%s162 + $0xb] sm:$0xff]
    %v464 = vstv %s461
    %v465 = vmul.f32 %v464, %v462
    %v466 = vmul.f32 %v464, %v463
    %v467 = vadd.f32 %v459, %v465
    %v468 = vadd.f32 %v460, %v466
    %s469 = sld [smem:[#allocation4 + $0x19]]
    %v470 = vld [vmem:[%s183 + $0x3] sm:$0xff]
    %v471 = vld [vmem:[%s183 + $0xb] sm:$0xff]
    %v472 = vstv %s469
    %v473 = vmul.f32 %v472, %v470
    %v474 = vmul.f32 %v472, %v471
    %v475 = vadd.f32 %v467, %v473
    %v476 = vadd.f32 %v468, %v474
    %s477 = sld [smem:[#allocation4 + $0x1a]]
    %v478 = vld [vmem:[%s216 + $0x3] sm:$0xff]
    %v479 = vld [vmem:[%s216 + $0xb] sm:$0xff]
    %v480 = vstv %s477
    %v481 = vmul.f32 %v480, %v478
    %v482 = vmul.f32 %v480, %v479
    %v483 = vadd.f32 %v475, %v481
    %v484 = vadd.f32 %v476, %v482
    %s485 = sld [smem:[#allocation4 + $0x1b]]
    %v486 = vld [vmem:[%s249 + $0x3] sm:$0xff]
    %v487 = vld [vmem:[%s249 + $0xb] sm:$0xff]
    %v488 = vstv %s485
    %v489 = vmul.f32 %v488, %v486
    %v490 = vmul.f32 %v488, %v487
    %v491 = vadd.f32 %v483, %v489
    %v492 = vadd.f32 %v484, %v490
    %s493 = sld [smem:[#allocation4 + $0x1c]]
    %v494 = vld [vmem:[#allocation2 + $0x4] sm:$0xff]
    %v495 = vld [vmem:[#allocation2 + $0xc] sm:$0xff]
    %v496 = vstv %s493
    %v497 = vmul.f32 %v496, %v494
    %v498 = vmul.f32 %v496, %v495
    %v499 = vadd.f32 %v491, %v497
    %v500 = vadd.f32 %v492, %v498
    %s501 = sld [smem:[#allocation4 + $0x1d]]
    %v502 = vld [vmem:[%s109 + $0x4] sm:$0xff]
    %v503 = vld [vmem:[%s109 + $0xc] sm:$0xff]
    %v504 = vstv %s501
    %v505 = vmul.f32 %v504, %v502
    %v506 = vmul.f32 %v504, %v503
    %v507 = vadd.f32 %v499, %v505
    %v508 = vadd.f32 %v500, %v506
    %s509 = sld [smem:[#allocation4 + $0x1e]]
    %v510 = vld [vmem:[%s142 + $0x4] sm:$0xff]
    %v511 = vld [vmem:[%s142 + $0xc] sm:$0xff]
    %v512 = vstv %s509
    %v513 = vmul.f32 %v512, %v510
    %v514 = vmul.f32 %v512, %v511
    %v515 = vadd.f32 %v507, %v513
    %v516 = vadd.f32 %v508, %v514
    %s517 = sld [smem:[#allocation4 + $0x1f]]
    %v518 = vld [vmem:[%s162 + $0x4] sm:$0xff]
    %v519 = vld [vmem:[%s162 + $0xc] sm:$0xff]
    %v520 = vstv %s517
    %v521 = vmul.f32 %v520, %v518
    %v522 = vmul.f32 %v520, %v519
    %v523 = vadd.f32 %v515, %v521
    %v524 = vadd.f32 %v516, %v522
    %s525 = sld [smem:[#allocation4 + $0x20]]
    %v526 = vld [vmem:[%s183 + $0x4] sm:$0xff]
    %v527 = vld [vmem:[%s183 + $0xc] sm:$0xff]
    %v528 = vstv %s525
    %v529 = vmul.f32 %v528, %v526
    %v530 = vmul.f32 %v528, %v527
    %v531 = vadd.f32 %v523, %v529
    %v532 = vadd.f32 %v524, %v530
    %s533 = sld [smem:[#allocation4 + $0x21]]
    %v534 = vld [vmem:[%s216 + $0x4] sm:$0xff]
    %v535 = vld [vmem:[%s216 + $0xc] sm:$0xff]
    %v536 = vstv %s533
    %v537 = vmul.f32 %v536, %v534
    %v538 = vmul.f32 %v536, %v535
    %v539 = vadd.f32 %v531, %v537
    %v540 = vadd.f32 %v532, %v538
    %s541 = sld [smem:[#allocation4 + $0x22]]
    %v542 = vld [vmem:[%s249 + $0x4] sm:$0xff]
    %v543 = vld [vmem:[%s249 + $0xc] sm:$0xff]
    %v544 = vstv %s541
    %v545 = vmul.f32 %v544, %v542
    %v546 = vmul.f32 %v544, %v543
    %v547 = vadd.f32 %v539, %v545
    %v548 = vadd.f32 %v540, %v546
    %s549 = sld [smem:[#allocation4 + $0x23]]
    %v550 = vld [vmem:[#allocation2 + $0x5] sm:$0xff]
    %v551 = vld [vmem:[#allocation2 + $0xd] sm:$0xff]
    %v552 = vstv %s549
    %v553 = vmul.f32 %v552, %v550
    %v554 = vmul.f32 %v552, %v551
    %v555 = vadd.f32 %v547, %v553
    %v556 = vadd.f32 %v548, %v554
    %s557 = sld [smem:[#allocation4 + $0x24]]
    %v558 = vld [vmem:[%s109 + $0x5] sm:$0xff]
    %v559 = vld [vmem:[%s109 + $0xd] sm:$0xff]
    %v560 = vstv %s557
    %v561 = vmul.f32 %v560, %v558
    %v562 = vmul.f32 %v560, %v559
    %v563 = vadd.f32 %v555, %v561
    %v564 = vadd.f32 %v556, %v562
    %s565 = sld [smem:[#allocation4 + $0x25]]
    %v566 = vld [vmem:[%s142 + $0x5] sm:$0xff]
    %v567 = vld [vmem:[%s142 + $0xd] sm:$0xff]
    %v568 = vstv %s565
    %v569 = vmul.f32 %v568, %v566
    %v570 = vmul.f32 %v568, %v567
    %v571 = vadd.f32 %v563, %v569
    %v572 = vadd.f32 %v564, %v570
    %s573 = sld [smem:[#allocation4 + $0x26]]
    %v574 = vld [vmem:[%s162 + $0x5] sm:$0xff]
    %v575 = vld [vmem:[%s162 + $0xd] sm:$0xff]
    %v576 = vstv %s573
    %v577 = vmul.f32 %v576, %v574
    %v578 = vmul.f32 %v576, %v575
    %v579 = vadd.f32 %v571, %v577
    %v580 = vadd.f32 %v572, %v578
    %s581 = sld [smem:[#allocation4 + $0x27]]
    %v582 = vld [vmem:[%s183 + $0x5] sm:$0xff]
    %v583 = vld [vmem:[%s183 + $0xd] sm:$0xff]
    %v584 = vstv %s581
    %v585 = vmul.f32 %v584, %v582
    %v586 = vmul.f32 %v584, %v583
    %v587 = vadd.f32 %v579, %v585
    %v588 = vadd.f32 %v580, %v586
    %s589 = sld [smem:[#allocation4 + $0x28]]
    %v590 = vld [vmem:[%s216 + $0x5] sm:$0xff]
    %v591 = vld [vmem:[%s216 + $0xd] sm:$0xff]
    %v592 = vstv %s589
    %v593 = vmul.f32 %v592, %v590
    %v594 = vmul.f32 %v592, %v591
    %v595 = vadd.f32 %v587, %v593
    %v596 = vadd.f32 %v588, %v594
    %s597 = sld [smem:[#allocation4 + $0x29]]
    %v598 = vld [vmem:[%s249 + $0x5] sm:$0xff]
    %v599 = vld [vmem:[%s249 + $0xd] sm:$0xff]
    %v600 = vstv %s597
    %v601 = vmul.f32 %v600, %v598
    %v602 = vmul.f32 %v600, %v599
    %v603 = vadd.f32 %v595, %v601
    %v604 = vadd.f32 %v596, %v602
    %s605 = sld [smem:[#allocation4 + $0x2a]]
    %v606 = vld [vmem:[#allocation2 + $0x6] sm:$0xff]
    %v607 = vld [vmem:[#allocation2 + $0xe] sm:$0xff]
    %v608 = vstv %s605
    %v609 = vmul.f32 %v608, %v606
    %v610 = vmul.f32 %v608, %v607
    %v611 = vadd.f32 %v603, %v609
    %v612 = vadd.f32 %v604, %v610
    %s613 = sld [smem:[#allocation4 + $0x2b]]
    %v614 = vld [vmem:[%s109 + $0x6] sm:$0xff]
    %v615 = vld [vmem:[%s109 + $0xe] sm:$0xff]
    %v616 = vstv %s613
    %v617 = vmul.f32 %v616, %v614
    %v618 = vmul.f32 %v616, %v615
    %v619 = vadd.f32 %v611, %v617
    %v620 = vadd.f32 %v612, %v618
    %s621 = sld [smem:[#allocation4 + $0x2c]]
    %v622 = vld [vmem:[%s142 + $0x6] sm:$0xff]
    %v623 = vld [vmem:[%s142 + $0xe] sm:$0xff]
    %v624 = vstv %s621
    %v625 = vmul.f32 %v624, %v622
    %v626 = vmul.f32 %v624, %v623
    %v627 = vadd.f32 %v619, %v625
    %v628 = vadd.f32 %v620, %v626
    %s629 = sld [smem:[#allocation4 + $0x2d]]
    %v630 = vld [vmem:[%s162 + $0x6] sm:$0xff]
    %v631 = vld [vmem:[%s162 + $0xe] sm:$0xff]
    %v632 = vstv %s629
    %v633 = vmul.f32 %v632, %v630
    %v634 = vmul.f32 %v632, %v631
    %v635 = vadd.f32 %v627, %v633
    %v636 = vadd.f32 %v628, %v634
    %s637 = sld [smem:[#allocation4 + $0x2e]]
    %v638 = vld [vmem:[%s183 + $0x6] sm:$0xff]
    %v639 = vld [vmem:[%s183 + $0xe] sm:$0xff]
    %v640 = vstv %s637
    %v641 = vmul.f32 %v640, %v638
    %v642 = vmul.f32 %v640, %v639
    %v643 = vadd.f32 %v635, %v641
    %v644 = vadd.f32 %v636, %v642
    %s645 = sld [smem:[#allocation4 + $0x2f]]
    %v646 = vld [vmem:[%s216 + $0x6] sm:$0xff]
    %v647 = vld [vmem:[%s216 + $0xe] sm:$0xff]
    %v648 = vstv %s645
    %v649 = vmul.f32 %v648, %v646
    %v650 = vmul.f32 %v648, %v647
    %v651 = vadd.f32 %v643, %v649
    %v652 = vadd.f32 %v644, %v650
    %s653 = sld [smem:[#allocation4 + $0x30]]
    %v654 = vld [vmem:[%s249 + $0x6] sm:$0xff]
    %v655 = vld [vmem:[%s249 + $0xe] sm:$0xff]
    %v656 = vstv %s653
    %v657 = vmul.f32 %v656, %v654
    %v658 = vmul.f32 %v656, %v655
    %v659 = vadd.f32 %v651, %v657
    %v660 = vadd.f32 %v652, %v658
    %s661 = sld [smem:[#allocation4 + $0x31]]
    %v662 = vld [vmem:[#allocation3] sm:$0xff]
    %v663 = vld [vmem:[#allocation3 + $0x8] sm:$0xff]
    %v664 = vstv %s661
    %v665 = vmul.f32 %v664, %v662
    %v666 = vmul.f32 %v664, %v663
    %v667 = vadd.f32 %v659, %v665
    %v668 = vadd.f32 %v660, %v666
    %s669 = sld [smem:[#allocation4 + $0x32]]
    %v670 = vld [vmem:[%s125] sm:$0xff]
    %v671 = vld [vmem:[%s125 + $0x8] sm:$0xff]
    %v672 = vstv %s669
    %v673 = vmul.f32 %v672, %v670
    %v674 = vmul.f32 %v672, %v671
    %v675 = vadd.f32 %v667, %v673
    %v676 = vadd.f32 %v668, %v674
    %s677 = sld [smem:[#allocation4 + $0x33]]
    %v678 = vld [vmem:[%s158] sm:$0xff]
    %v679 = vld [vmem:[%s158 + $0x8] sm:$0xff]
    %v680 = vstv %s677
    %v681 = vmul.f32 %v680, %v678
    %v682 = vmul.f32 %v680, %v679
    %v683 = vadd.f32 %v675, %v681
    %v684 = vadd.f32 %v676, %v682
    %s685 = sld [smem:[#allocation4 + $0x34]]
    %v686 = vld [vmem:[%s166] sm:$0xff]
    %v687 = vld [vmem:[%s166 + $0x8] sm:$0xff]
    %v688 = vstv %s685
    %v689 = vmul.f32 %v688, %v686
    %v690 = vmul.f32 %v688, %v687
    %v691 = vadd.f32 %v683, %v689
    %v692 = vadd.f32 %v684, %v690
    %s693 = sld [smem:[#allocation4 + $0x35]]
    %v694 = vld [vmem:[%s199] sm:$0xff]
    %v695 = vld [vmem:[%s199 + $0x8] sm:$0xff]
    %v696 = vstv %s693
    %v697 = vmul.f32 %v696, %v694
    %v698 = vmul.f32 %v696, %v695
    %v699 = vadd.f32 %v691, %v697
    %v700 = vadd.f32 %v692, %v698
    %s701 = sld [smem:[#allocation4 + $0x36]]
    %v702 = vld [vmem:[%s232] sm:$0xff]
    %v703 = vld [vmem:[%s232 + $0x8] sm:$0xff]
    %v704 = vstv %s701
    %v705 = vmul.f32 %v704, %v702
    %v706 = vmul.f32 %v704, %v703
    %v707 = vadd.f32 %v699, %v705
    %v708 = vadd.f32 %v700, %v706
    %s709 = sld [smem:[#allocation4 + $0x37]]
    %v710 = vld [vmem:[%s265] sm:$0xff]
    %v711 = vld [vmem:[%s265 + $0x8] sm:$0xff]
    %v712 = vstv %s709
    %v713 = vmul.f32 %v712, %v710
    %v714 = vmul.f32 %v712, %v711
    %v715 = vadd.f32 %v707, %v713
    %v716 = vadd.f32 %v708, %v714
    %s717 = sld [smem:[#allocation4 + $0x38]]
    %v718 = vld [vmem:[#allocation3 + $0x1] sm:$0xff]
    %v719 = vld [vmem:[#allocation3 + $0x9] sm:$0xff]
    %v720 = vstv %s717
    %v721 = vmul.f32 %v720, %v718
    %v722 = vmul.f32 %v720, %v719
    %v723 = vadd.f32 %v715, %v721
    %v724 = vadd.f32 %v716, %v722
    %s725 = sld [smem:[#allocation4 + $0x39]]
    %v726 = vld [vmem:[%s125 + $0x1] sm:$0xff]
    %v727 = vld [vmem:[%s125 + $0x9] sm:$0xff]
    %v728 = vstv %s725
    %v729 = vmul.f32 %v728, %v726
    %v730 = vmul.f32 %v728, %v727
    %v731 = vadd.f32 %v723, %v729
    %v732 = vadd.f32 %v724, %v730
    %s733 = sld [smem:[#allocation4 + $0x3a]]
    %v734 = vld [vmem:[%s158 + $0x1] sm:$0xff]
    %v735 = vld [vmem:[%s158 + $0x9] sm:$0xff]
    %v736 = vstv %s733
    %v737 = vmul.f32 %v736, %v734
    %v738 = vmul.f32 %v736, %v735
    %v739 = vadd.f32 %v731, %v737
    %v740 = vadd.f32 %v732, %v738
    %s741 = sld [smem:[#allocation4 + $0x3b]]
    %v742 = vld [vmem:[%s166 + $0x1] sm:$0xff]
    %v743 = vld [vmem:[%s166 + $0x9] sm:$0xff]
    %v744 = vstv %s741
    %v745 = vmul.f32 %v744, %v742
    %v746 = vmul.f32 %v744, %v743
    %v747 = vadd.f32 %v739, %v745
    %v748 = vadd.f32 %v740, %v746
    %s749 = sld [smem:[#allocation4 + $0x3c]]
    %v750 = vld [vmem:[%s199 + $0x1] sm:$0xff]
    %v751 = vld [vmem:[%s199 + $0x9] sm:$0xff]
    %v752 = vstv %s749
    %v753 = vmul.f32 %v752, %v750
    %v754 = vmul.f32 %v752, %v751
    %v755 = vadd.f32 %v747, %v753
    %v756 = vadd.f32 %v748, %v754
    %s757 = sld [smem:[#allocation4 + $0x3d]]
    %v758 = vld [vmem:[%s232 + $0x1] sm:$0xff]
    %v759 = vld [vmem:[%s232 + $0x9] sm:$0xff]
    %v760 = vstv %s757
    %v761 = vmul.f32 %v760, %v758
    %v762 = vmul.f32 %v760, %v759
    %v763 = vadd.f32 %v755, %v761
    %v764 = vadd.f32 %v756, %v762
    %s765 = sld [smem:[#allocation4 + $0x3e]]
    %v766 = vld [vmem:[%s265 + $0x1] sm:$0xff]
    %v767 = vld [vmem:[%s265 + $0x9] sm:$0xff]
    %v768 = vstv %s765
    %v769 = vmul.f32 %v768, %v766
    %v770 = vmul.f32 %v768, %v767
    %v771 = vadd.f32 %v763, %v769
    %v772 = vadd.f32 %v764, %v770
    %s773 = sld [smem:[#allocation4 + $0x3f]]
    %v774 = vld [vmem:[#allocation3 + $0x2] sm:$0xff]
    %v775 = vld [vmem:[#allocation3 + $0xa] sm:$0xff]
    %v776 = vstv %s773
    %v777 = vmul.f32 %v776, %v774
    %v778 = vmul.f32 %v776, %v775
    %v779 = vadd.f32 %v771, %v777
    %v780 = vadd.f32 %v772, %v778
    %s781 = sld [smem:[#allocation4 + $0x40]]
    %v782 = vld [vmem:[%s125 + $0x2] sm:$0xff]
    %v783 = vld [vmem:[%s125 + $0xa] sm:$0xff]
    %v784 = vstv %s781
    %v785 = vmul.f32 %v784, %v782
    %v786 = vmul.f32 %v784, %v783
    %v787 = vadd.f32 %v779, %v785
    %v788 = vadd.f32 %v780, %v786
    %s789 = sld [smem:[#allocation4 + $0x41]]
    %v790 = vld [vmem:[%s158 + $0x2] sm:$0xff]
    %v791 = vld [vmem:[%s158 + $0xa] sm:$0xff]
    %v792 = vstv %s789
    %v793 = vmul.f32 %v792, %v790
    %v794 = vmul.f32 %v792, %v791
    %v795 = vadd.f32 %v787, %v793
    %v796 = vadd.f32 %v788, %v794
    %s797 = sld [smem:[#allocation4 + $0x42]]
    %v798 = vld [vmem:[%s166 + $0x2] sm:$0xff]
    %v799 = vld [vmem:[%s166 + $0xa] sm:$0xff]
    %v800 = vstv %s797
    %v801 = vmul.f32 %v800, %v798
    %v802 = vmul.f32 %v800, %v799
    %v803 = vadd.f32 %v795, %v801
    %v804 = vadd.f32 %v796, %v802
    %s805 = sld [smem:[#allocation4 + $0x43]]
    %v806 = vld [vmem:[%s199 + $0x2] sm:$0xff]
    %v807 = vld [vmem:[%s199 + $0xa] sm:$0xff]
    %v808 = vstv %s805
    %v809 = vmul.f32 %v808, %v806
    %v810 = vmul.f32 %v808, %v807
    %v811 = vadd.f32 %v803, %v809
    %v812 = vadd.f32 %v804, %v810
    %s813 = sld [smem:[#allocation4 + $0x44]]
    %v814 = vld [vmem:[%s232 + $0x2] sm:$0xff]
    %v815 = vld [vmem:[%s232 + $0xa] sm:$0xff]
    %v816 = vstv %s813
    %v817 = vmul.f32 %v816, %v814
    %v818 = vmul.f32 %v816, %v815
    %v819 = vadd.f32 %v811, %v817
    %v820 = vadd.f32 %v812, %v818
    %s821 = sld [smem:[#allocation4 + $0x45]]
    %v822 = vld [vmem:[%s265 + $0x2] sm:$0xff]
    %v823 = vld [vmem:[%s265 + $0xa] sm:$0xff]
    %v824 = vstv %s821
    %v825 = vmul.f32 %v824, %v822
    %v826 = vmul.f32 %v824, %v823
    %v827 = vadd.f32 %v819, %v825
    %v828 = vadd.f32 %v820, %v826
    %s829 = sld [smem:[#allocation4 + $0x46]]
    %v830 = vld [vmem:[#allocation3 + $0x3] sm:$0xff]
    %v831 = vld [vmem:[#allocation3 + $0xb] sm:$0xff]
    %v832 = vstv %s829
    %v833 = vmul.f32 %v832, %v830
    %v834 = vmul.f32 %v832, %v831
    %v835 = vadd.f32 %v827, %v833
    %v836 = vadd.f32 %v828, %v834
    %s837 = sld [smem:[#allocation4 + $0x47]]
    %v838 = vld [vmem:[%s125 + $0x3] sm:$0xff]
    %v839 = vld [vmem:[%s125 + $0xb] sm:$0xff]
    %v840 = vstv %s837
    %v841 = vmul.f32 %v840, %v838
    %v842 = vmul.f32 %v840, %v839
    %v843 = vadd.f32 %v835, %v841
    %v844 = vadd.f32 %v836, %v842
    %s845 = sld [smem:[#allocation4 + $0x48]]
    %v846 = vld [vmem:[%s158 + $0x3] sm:$0xff]
    %v847 = vld [vmem:[%s158 + $0xb] sm:$0xff]
    %v848 = vstv %s845
    %v849 = vmul.f32 %v848, %v846
    %v850 = vmul.f32 %v848, %v847
    %v851 = vadd.f32 %v843, %v849
    %v852 = vadd.f32 %v844, %v850
    %s853 = sld [smem:[#allocation4 + $0x49]]
    %v854 = vld [vmem:[%s166 + $0x3] sm:$0xff]
    %v855 = vld [vmem:[%s166 + $0xb] sm:$0xff]
    %v856 = vstv %s853
    %v857 = vmul.f32 %v856, %v854
    %v858 = vmul.f32 %v856, %v855
    %v859 = vadd.f32 %v851, %v857
    %v860 = vadd.f32 %v852, %v858
    %s861 = sld [smem:[#allocation4 + $0x4a]]
    %v862 = vld [vmem:[%s199 + $0x3] sm:$0xff]
    %v863 = vld [vmem:[%s199 + $0xb] sm:$0xff]
    %v864 = vstv %s861
    %v865 = vmul.f32 %v864, %v862
    %v866 = vmul.f32 %v864, %v863
    %v867 = vadd.f32 %v859, %v865
    %v868 = vadd.f32 %v860, %v866
    %s869 = sld [smem:[#allocation4 + $0x4b]]
    %v870 = vld [vmem:[%s232 + $0x3] sm:$0xff]
    %v871 = vld [vmem:[%s232 + $0xb] sm:$0xff]
    %v872 = vstv %s869
    %v873 = vmul.f32 %v872, %v870
    %v874 = vmul.f32 %v872, %v871
    %v875 = vadd.f32 %v867, %v873
    %v876 = vadd.f32 %v868, %v874
    %s877 = sld [smem:[#allocation4 + $0x4c]]
    %v878 = vld [vmem:[%s265 + $0x3] sm:$0xff]
    %v879 = vld [vmem:[%s265 + $0xb] sm:$0xff]
    %v880 = vstv %s877
    %v881 = vmul.f32 %v880, %v878
    %v882 = vmul.f32 %v880, %v879
    %v883 = vadd.f32 %v875, %v881
    %v884 = vadd.f32 %v876, %v882
    %s885 = sld [smem:[#allocation4 + $0x4d]]
    %v886 = vld [vmem:[#allocation3 + $0x4] sm:$0xff]
    %v887 = vld [vmem:[#allocation3 + $0xc] sm:$0xff]
    %v888 = vstv %s885
    %v889 = vmul.f32 %v888, %v886
    %v890 = vmul.f32 %v888, %v887
    %v891 = vadd.f32 %v883, %v889
    %v892 = vadd.f32 %v884, %v890
    %s893 = sld [smem:[#allocation4 + $0x4e]]
    %v894 = vld [vmem:[%s125 + $0x4] sm:$0xff]
    %v895 = vld [vmem:[%s125 + $0xc] sm:$0xff]
    %v896 = vstv %s893
    %v897 = vmul.f32 %v896, %v894
    %v898 = vmul.f32 %v896, %v895
    %v899 = vadd.f32 %v891, %v897
    %v900 = vadd.f32 %v892, %v898
    %s901 = sld [smem:[#allocation4 + $0x4f]]
    %v902 = vld [vmem:[%s158 + $0x4] sm:$0xff]
    %v903 = vld [vmem:[%s158 + $0xc] sm:$0xff]
    %v904 = vstv %s901
    %v905 = vmul.f32 %v904, %v902
    %v906 = vmul.f32 %v904, %v903
    %v907 = vadd.f32 %v899, %v905
    %v908 = vadd.f32 %v900, %v906
    %s909 = sld [smem:[#allocation4 + $0x50]]
    %v910 = vld [vmem:[%s166 + $0x4] sm:$0xff]
    %v911 = vld [vmem:[%s166 + $0xc] sm:$0xff]
    %v912 = vstv %s909
    %v913 = vmul.f32 %v912, %v910
    %v914 = vmul.f32 %v912, %v911
    %v915 = vadd.f32 %v907, %v913
    %v916 = vadd.f32 %v908, %v914
    %s917 = sld [smem:[#allocation4 + $0x51]]
    %v918 = vld [vmem:[%s199 + $0x4] sm:$0xff]
    %v919 = vld [vmem:[%s199 + $0xc] sm:$0xff]
    %v920 = vstv %s917
    %v921 = vmul.f32 %v920, %v918
    %v922 = vmul.f32 %v920, %v919
    %v923 = vadd.f32 %v915, %v921
    %v924 = vadd.f32 %v916, %v922
    %s925 = sld [smem:[#allocation4 + $0x52]]
    %v926 = vld [vmem:[%s232 + $0x4] sm:$0xff]
    %v927 = vld [vmem:[%s232 + $0xc] sm:$0xff]
    %v928 = vstv %s925
    %v929 = vmul.f32 %v928, %v926
    %v930 = vmul.f32 %v928, %v927
    %v931 = vadd.f32 %v923, %v929
    %v932 = vadd.f32 %v924, %v930
    %s933 = sld [smem:[#allocation4 + $0x53]]
    %v934 = vld [vmem:[%s265 + $0x4] sm:$0xff]
    %v935 = vld [vmem:[%s265 + $0xc] sm:$0xff]
    %v936 = vstv %s933
    %v937 = vmul.f32 %v936, %v934
    %v938 = vmul.f32 %v936, %v935
    %v939 = vadd.f32 %v931, %v937
    %v940 = vadd.f32 %v932, %v938
    %s941 = sld [smem:[#allocation4 + $0x54]]
    %v942 = vld [vmem:[#allocation3 + $0x5] sm:$0xff]
    %v943 = vld [vmem:[#allocation3 + $0xd] sm:$0xff]
    %v944 = vstv %s941
    %v945 = vmul.f32 %v944, %v942
    %v946 = vmul.f32 %v944, %v943
    %v947 = vadd.f32 %v939, %v945
    %v948 = vadd.f32 %v940, %v946
    %s949 = sld [smem:[#allocation4 + $0x55]]
    %v950 = vld [vmem:[%s125 + $0x5] sm:$0xff]
    %v951 = vld [vmem:[%s125 + $0xd] sm:$0xff]
    %v952 = vstv %s949
    %v953 = vmul.f32 %v952, %v950
    %v954 = vmul.f32 %v952, %v951
    %v955 = vadd.f32 %v947, %v953
    %v956 = vadd.f32 %v948, %v954
    %s957 = sld [smem:[#allocation4 + $0x56]]
    %v958 = vld [vmem:[%s158 + $0x5] sm:$0xff]
    %v959 = vld [vmem:[%s158 + $0xd] sm:$0xff]
    %v960 = vstv %s957
    %v961 = vmul.f32 %v960, %v958
    %v962 = vmul.f32 %v960, %v959
    %v963 = vadd.f32 %v955, %v961
    %v964 = vadd.f32 %v956, %v962
    %s965 = sld [smem:[#allocation4 + $0x57]]
    %v966 = vld [vmem:[%s166 + $0x5] sm:$0xff]
    %v967 = vld [vmem:[%s166 + $0xd] sm:$0xff]
    %v968 = vstv %s965
    %v969 = vmul.f32 %v968, %v966
    %v970 = vmul.f32 %v968, %v967
    %v971 = vadd.f32 %v963, %v969
    %v972 = vadd.f32 %v964, %v970
    %s973 = sld [smem:[#allocation4 + $0x58]]
    %v974 = vld [vmem:[%s199 + $0x5] sm:$0xff]
    %v975 = vld [vmem:[%s199 + $0xd] sm:$0xff]
    %v976 = vstv %s973
    %v977 = vmul.f32 %v976, %v974
    %v978 = vmul.f32 %v976, %v975
    %v979 = vadd.f32 %v971, %v977
    %v980 = vadd.f32 %v972, %v978
    %s981 = sld [smem:[#allocation4 + $0x59]]
    %v982 = vld [vmem:[%s232 + $0x5] sm:$0xff]
    %v983 = vld [vmem:[%s232 + $0xd] sm:$0xff]
    %v984 = vstv %s981
    %v985 = vmul.f32 %v984, %v982
    %v986 = vmul.f32 %v984, %v983
    %v987 = vadd.f32 %v979, %v985
    %v988 = vadd.f32 %v980, %v986
    %s989 = sld [smem:[#allocation4 + $0x5a]]
    %v990 = vld [vmem:[%s265 + $0x5] sm:$0xff]
    %v991 = vld [vmem:[%s265 + $0xd] sm:$0xff]
    %v992 = vstv %s989
    %v993 = vmul.f32 %v992, %v990
    %v994 = vmul.f32 %v992, %v991
    %v995 = vadd.f32 %v987, %v993
    %v996 = vadd.f32 %v988, %v994
    %s997 = sld [smem:[#allocation4 + $0x5b]]
    %v998 = vld [vmem:[#allocation3 + $0x6] sm:$0xff]
    %v999 = vld [vmem:[#allocation3 + $0xe] sm:$0xff]
    %v1000 = vstv %s997
    %v1001 = vmul.f32 %v1000, %v998
    %v1002 = vmul.f32 %v1000, %v999
    %v1003 = vadd.f32 %v995, %v1001
    %v1004 = vadd.f32 %v996, %v1002
    %s1005 = sld [smem:[#allocation4 + $0x5c]]
    %v1006 = vld [vmem:[%s125 + $0x6] sm:$0xff]
    %v1007 = vld [vmem:[%s125 + $0xe] sm:$0xff]
    %v1008 = vstv %s1005
    %v1009 = vmul.f32 %v1008, %v1006
    %v1010 = vmul.f32 %v1008, %v1007
    %v1011 = vadd.f32 %v1003, %v1009
    %v1012 = vadd.f32 %v1004, %v1010
    %s1013 = sld [smem:[#allocation4 + $0x5d]]
    %v1014 = vld [vmem:[%s158 + $0x6] sm:$0xff]
    %v1015 = vld [vmem:[%s158 + $0xe] sm:$0xff]
    %v1016 = vstv %s1013
    %v1017 = vmul.f32 %v1016, %v1014
    %v1018 = vmul.f32 %v1016, %v1015
    %v1019 = vadd.f32 %v1011, %v1017
    %v1020 = vadd.f32 %v1012, %v1018
    %s1021 = sld [smem:[#allocation4 + $0x5e]]
    %v1022 = vld [vmem:[%s166 + $0x6] sm:$0xff]
    %v1023 = vld [vmem:[%s166 + $0xe] sm:$0xff]
    %v1024 = vstv %s1021
    %v1025 = vmul.f32 %v1024, %v1022
    %v1026 = vmul.f32 %v1024, %v1023
    %v1027 = vadd.f32 %v1019, %v1025
    %v1028 = vadd.f32 %v1020, %v1026
    %s1029 = sld [smem:[#allocation4 + $0x5f]]
    %v1030 = vld [vmem:[%s199 + $0x6] sm:$0xff]
    %v1031 = vld [vmem:[%s199 + $0xe] sm:$0xff]
    %v1032 = vstv %s1029
    %v1033 = vmul.f32 %v1032, %v1030
    %v1034 = vmul.f32 %v1032, %v1031
    %v1035 = vadd.f32 %v1027, %v1033
    %v1036 = vadd.f32 %v1028, %v1034
    %s1037 = sld [smem:[#allocation4 + $0x60]]
    %v1038 = vld [vmem:[%s232 + $0x6] sm:$0xff]
    %v1039 = vld [vmem:[%s232 + $0xe] sm:$0xff]
    %v1040 = vstv %s1037
    %v1041 = vmul.f32 %v1040, %v1038
    %v1042 = vmul.f32 %v1040, %v1039
    %v1043 = vadd.f32 %v1035, %v1041
    %v1044 = vadd.f32 %v1036, %v1042
    %s1045 = sld [smem:[#allocation4 + $0x61]]
    %v1046 = vld [vmem:[%s265 + $0x6] sm:$0xff]
    %v1047 = vld [vmem:[%s265 + $0xe] sm:$0xff]
    %v1048 = vstv %s1045
    %v1049 = vmul.f32 %v1048, %v1046
    %v1050 = vmul.f32 %v1048, %v1047
    %v1051 = vadd.f32 %v1043, %v1049
    %v1052 = vadd.f32 %v1044, %v1050
    %v1053 = vmul.f32 %v1051, 0.5
    %v1054 = vmul.f32 %v1052, 0.5
    %v1055 = vtanh.pop %v1053
    %v1056 = vtanh.pop %v1054
    %v1057 = vadd.f32 %v1055, 1.0
    %v1058 = vadd.f32 %v1056, 1.0
    %v1059 = vmul.f32 %v1057, 0.5
    %v1060 = vmul.f32 %v1058, 0.5
    %1063 = vrot.lane.b32.xlu0 %v1059, 125
    %v1064 = vpop.permute.xlu0 %1063
    %1065 = vrot.lane.b32.xlu0 %v1060, 125
    %v1066 = vpop.permute.xlu0 %1065
    %1069 = vrot.lane.b32.xlu0 %v1059, 119
    %v1070 = vpop.permute.xlu0 %1069
    %1071 = vrot.lane.b32.xlu0 %v1060, 119
    %v1072 = vpop.permute.xlu0 %1071
    %vm1075 = vcmask 130048
    %v1076 = vsel %vm1075, %v1064, %v1070
    %v1077 = vsel %vm1075, %v1066, %v1072
    %vm1078 = vcmask 261120
    %1079 = vst.msk [vmem:[%s2] sm:$0xff] %vm1078, %v1076
    %1080 = vst.msk [vmem:[%s2 + $0x8] sm:$0xff] %vm1078, %v1077
    // Predicated region
    $region14: #{spatial_attention.1} parent=1 // pred_check
      _
    $region15: #{spatial_attention.1} parent=1 // pred_check_branch
      %1082 = sbr.rel (0) target = $region17
    $region16: #{spatial_attention.1} parent=1 // pred_region
      _
    $region17: #{spatial_attention.1} parent=1 // pred_fallthru
      _
    // Predicated region
    $region18: #{spatial_attention.1} parent=1 // pred_check
      _
    $region19: #{spatial_attention.1} parent=1 // pred_check_branch
      %1084 = sbr.rel (0) target = $region21
    $region20: #{spatial_attention.1} parent=1 // pred_region
      _
    $region21: #{spatial_attention.1} parent=1 // pred_fallthru
      _
    %1085 = vsyncpa [#allocation5], 1

</llo_original>
